<compile_context>
chip_gen: v5e
topology: v5e:2x2
jax: 0.10.0
libtpu: 0.0.40
codegen_flags: <defaults>
</compile_context>

<pallas_src>
import functools

import jax
import jax.numpy as jnp
from jax.experimental import pallas as pl
from jax.experimental.pallas import tpu as pltpu

LANE = 128
TM_CAP = 2048


def _round_up(x, m):
    return ((x + m - 1) // m) * m


def _sublane(dtype):
    # f32 -> 8 rows per vreg sublane tile, bf16/f16 -> 16 (packed).
    return 8 if jnp.dtype(dtype).itemsize >= 4 else 16


# ---------------------------------------------------------------------------
# Fused kernel: x -> encoder (Linear+ReLU ... Linear) -> decoder (...) in VMEM
# ---------------------------------------------------------------------------
def _fused_autoenc_kernel(*refs, n_enc: int, n_dec: int):
    """refs = (x_ref, w0,b0, ..., w_{L-1},b_{L-1}, out_ref, red_ref)."""
    n_layers = n_enc + n_dec
    x_ref = refs[0]
    param_refs = refs[1:1 + 2 * n_layers]
    out_ref = refs[1 + 2 * n_layers]
    red_ref = refs[2 + 2 * n_layers]

    compute_dtype = x_ref.dtype

    def run_block(h, first, count):
        # MLP block: Linear + ReLU for every layer except the last Linear.
        for i in range(count):
            w = param_refs[2 * (first + i)][...]
            b = param_refs[2 * (first + i) + 1][...]        # [1, N] broadcast
            acc = jnp.dot(h, w, preferred_element_type=jnp.float32)
            acc = acc + b.astype(jnp.float32)
            if i < count - 1:
                acc = jnp.maximum(acc, 0.0)
            h = acc.astype(compute_dtype)
        return h

    h = run_block(x_ref[...], 0, n_enc)            # latent (padded width)
    red_ref[...] = h.astype(red_ref.dtype)
    h = run_block(h, n_enc, n_dec)                 # reconstruction (padded)
    out_ref[...] = h.astype(out_ref.dtype)


# ---------------------------------------------------------------------------
# Parameter construction (PyTorch nn.Linear-style init), stored as W:[in,out]
# ---------------------------------------------------------------------------
def init_linear(key, in_dim, out_dim, dtype=jnp.float32):
    kw, kb = jax.random.split(key)
    bound = 1.0 / jnp.sqrt(jnp.float32(in_dim))
    w = jax.random.uniform(kw, (in_dim, out_dim), dtype, minval=-bound, maxval=bound)
    b = jax.random.uniform(kb, (1, out_dim), dtype, minval=-bound, maxval=bound)
    return w, b


def build_mpl_params(key, input_dim, output_dim, hiddens):
    dims = [input_dim] + list(hiddens) + [output_dim]
    keys = jax.random.split(key, len(dims) - 1)
    return [init_linear(keys[i], dims[i], dims[i + 1]) for i in range(len(dims) - 1)]


# ---------------------------------------------------------------------------
# Wrapper: one pallas_call for the whole autoencoder forward
# ---------------------------------------------------------------------------
def mlp_autoenc_forward(enc_params, dec_params, x, *,
                        compute_dtype=jnp.float32, return_padded=False):
    # randomize_input=False path -> no Gaussian noise.
    n_enc, n_dec = len(enc_params), len(dec_params)
    latent_dim = enc_params[-1][0].shape[1]
    out_dim = dec_params[-1][0].shape[1]
    out_dtype = x.dtype

    M, d_in = x.shape
    row_align = _sublane(compute_dtype)
    k_align = row_align

    # ---- pad parameters --------------------------------------------------
    # Layer 0: K padded only to the sublane multiple (de-pads x HBM traffic).
    # Layer i>0: K_pad must equal layer i-1's N_pad so the VMEM chain matches.
    # All N dims padded to 128 (lane-dense).  Zero padding is exact: padded
    # input lanes hit zero weight rows, padded output lanes get zero columns
    # and zero bias, and ReLU(0) == 0, so real outputs are unchanged.
    params = list(enc_params) + list(dec_params)
    padded = []
    k_pad = _round_up(d_in, k_align)
    d_in_p = k_pad
    for w, b in params:
        n_pad = _round_up(w.shape[1], LANE)
        w_p = jnp.pad(w.astype(compute_dtype),
                      ((0, k_pad - w.shape[0]), (0, n_pad - w.shape[1])))
        b_p = jnp.pad(b.astype(compute_dtype), ((0, 0), (0, n_pad - b.shape[1])))
        padded.append((w_p, b_p))
        k_pad = n_pad
    latent_p = padded[n_enc - 1][0].shape[1]
    out_p = padded[-1][0].shape[1]

    # ---- batch tiling ------------------------------------------------------
    # TM up to 2048 rows; force >= 2 grid steps when the batch allows it so the
    # "parallel" axis shards across both v7x TensorCores.  TM is derived from
    # ceil(m/n_tiles) so the batch round-up adds at most a handful of rows.
    m8 = _round_up(max(M, row_align), row_align)
    if m8 > row_align:
        n_tiles = max(2, -(-m8 // TM_CAP))
        tm = _round_up(-(-m8 // n_tiles), row_align)
    else:
        tm = m8
    m_p = _round_up(m8, tm)
    grid = (m_p // tm,)

    x_p = jnp.pad(x.astype(compute_dtype), ((0, m_p - M), (0, d_in_p - d_in)))

    flat_params = []
    for w_p, b_p in padded:
        flat_params.extend([w_p, b_p])

    # ---- cost estimate -----------------------------------------------------
    flops = 0
    k = d_in_p
    for w_p, _ in padded:
        flops += 2 * m_p * k * w_p.shape[1]
        k = w_p.shape[1]
    bytes_accessed = x_p.size * x_p.dtype.itemsize
    for w_p, b_p in padded:
        bytes_accessed += w_p.size * w_p.dtype.itemsize + b_p.size * b_p.dtype.itemsize
    bytes_accessed += (m_p * out_p + m_p * latent_p) * jnp.dtype(out_dtype).itemsize
    cost = pl.CostEstimate(flops=int(flops), transcendentals=0,
                           bytes_accessed=int(bytes_accessed))

    # ---- VMEM budget (single-buffered weights + double-buffered x/out/red) --
    c_item = jnp.dtype(compute_dtype).itemsize
    o_item = jnp.dtype(out_dtype).itemsize
    weight_bytes = sum(w.size * c_item + b.size * c_item for w, b in padded)
    io_bytes = 2 * (tm * d_in_p * c_item + (tm * out_p + tm * latent_p) * o_item)
    act_bytes = 4 * tm * max(w.shape[1] for w, _ in padded) * 4   # f32 accumulators
    needed = weight_bytes + io_bytes + act_bytes
    vmem_limit = int(min(max(2 * needed, 32 << 20), 64 << 20))

    out_shape = (
        jax.ShapeDtypeStruct((m_p, out_p), out_dtype),
        jax.ShapeDtypeStruct((m_p, latent_p), out_dtype),
    )
    out_specs = (
        pl.BlockSpec((tm, out_p), lambda i: (i, 0)),
        pl.BlockSpec((tm, latent_p), lambda i: (i, 0)),
    )
    kernel = functools.partial(_fused_autoenc_kernel, n_enc=n_enc, n_dec=n_dec)

    def build_call(weight_mode):
        in_specs = [pl.BlockSpec((tm, d_in_p), lambda i: (i, 0))]
        kw = {} if weight_mode is None else {"pipeline_mode": weight_mode}
        for w_p, b_p in padded:
            in_specs.append(pl.BlockSpec(tuple(w_p.shape), lambda i: (0, 0), **kw))
            in_specs.append(pl.BlockSpec(tuple(b_p.shape), lambda i: (0, 0), **kw))
        return pl.pallas_call(
            kernel,
            out_shape=out_shape,
            grid=grid,
            in_specs=in_specs,
            out_specs=out_specs,
            compiler_params=pltpu.CompilerParams(
                dimension_semantics=("parallel",),
                vmem_limit_bytes=vmem_limit,
            ),
            cost_estimate=cost,
        )

    try:
        # Weights/biases never change block index -> single-buffer them.
        out_pad, red_pad = build_call(pl.Buffered(1))(x_p, *flat_params)
    except Exception:
        # Fallback: default (double) buffering if Buffered(1) is rejected.
        out_pad, red_pad = build_call(None)(x_p, *flat_params)

    if return_padded:
        return out_pad, red_pad
    # Note: these slices are separate XLA copies; callers that can consume the
    # padded/lane-dense layout should pass return_padded=True.
    return out_pad[:M, :out_dim], red_pad[:M, :latent_dim]


# ---------------------------------------------------------------------------
# Reference (plain JAX, unpadded) forward for correctness checks
# ---------------------------------------------------------------------------
def _ref_mpl(params, h):
    n = len(params)
    for i, (w, b) in enumerate(params):
        h = h @ w + b
        if i < n - 1:
            h = jnp.maximum(h, 0.0)
    return h


if __name__ == "__main__":
    # Small deterministic config consistent with the module's constructor:
    #   input_dim=32, latent_dim=8, encoder_layers=[64, 32], decoder_layers=[32, 64]
    batch = 8
    input_dim = 32
    latent_dim = 8
    encoder_layers = [64, 32]
    decoder_layers = [32, 64]

    root = jax.random.PRNGKey(0)
    k_x, k_enc, k_dec, k_x2 = jax.random.split(root, 4)

    x = jax.random.uniform(k_x, (batch, input_dim), jnp.float32)

    enc_params = build_mpl_params(k_enc, input_dim, latent_dim, encoder_layers)
    dec_params = build_mpl_params(k_dec, latent_dim, input_dim, decoder_layers)

    # --- f32 path (default): single grid step at this tiny batch ----------
    output, red_vec = mlp_autoenc_forward(enc_params, dec_params, x)
    jax.block_until_ready((output, red_vec))

    ref_red = _ref_mpl(enc_params, x)
    ref_out = _ref_mpl(dec_params, ref_red)

    assert output.shape == (batch, input_dim)
    assert red_vec.shape == (batch, latent_dim)
    assert jnp.allclose(red_vec, ref_red, atol=1e-4, rtol=1e-4)
    assert jnp.allclose(output, ref_out, atol=1e-4, rtol=1e-4)

    # --- f32 path with a batch large enough to take the multi-tile (>=2-step
    #     "parallel" grid, v7x megacore) path --------------------------------
    batch2 = 48
    x2 = jax.random.uniform(k_x2, (batch2, input_dim), jnp.float32)
    out2, red2 = mlp_autoenc_forward(enc_params, dec_params, x2)
    jax.block_until_ready((out2, red2))
    ref_red2 = _ref_mpl(enc_params, x2)
    ref_out2 = _ref_mpl(dec_params, ref_red2)
    assert jnp.allclose(red2, ref_red2, atol=1e-4, rtol=1e-4)
    assert jnp.allclose(out2, ref_out2, atol=1e-4, rtol=1e-4)

    # --- bf16 compute path (v6e/v7x MXU lever): f32 accumulation, loose check
    out_bf, red_bf = mlp_autoenc_forward(enc_params, dec_params, x,
                                         compute_dtype=jnp.bfloat16)
    jax.block_until_ready((out_bf, red_bf))
    assert out_bf.shape == (batch, input_dim)
    assert red_bf.shape == (batch, latent_dim)
    assert bool(jnp.all(jnp.isfinite(out_bf)))

    # TODO(synk): loss()/Adam optimizer and addGaussianNoise (randomize_input=True
    # path) are training-time / host-side features, not part of this forward kernel.

    print("KERNEL_OK")
</pallas_src>

<mosaic_0001>
module attributes {stable_mosaic.version = 11 : i64} {
  func.func @_fused_autoenc_kernel(%arg0: i32, %arg1: memref<8x32xf32, #tpu.memory_space<vmem>>, %arg2: memref<32x128xf32, #tpu.memory_space<vmem>>, %arg3: memref<1x128xf32, #tpu.memory_space<vmem>>, %arg4: memref<128x128xf32, #tpu.memory_space<vmem>>, %arg5: memref<1x128xf32, #tpu.memory_space<vmem>>, %arg6: memref<128x128xf32, #tpu.memory_space<vmem>>, %arg7: memref<1x128xf32, #tpu.memory_space<vmem>>, %arg8: memref<128x128xf32, #tpu.memory_space<vmem>>, %arg9: memref<1x128xf32, #tpu.memory_space<vmem>>, %arg10: memref<128x128xf32, #tpu.memory_space<vmem>>, %arg11: memref<1x128xf32, #tpu.memory_space<vmem>>, %arg12: memref<128x128xf32, #tpu.memory_space<vmem>>, %arg13: memref<1x128xf32, #tpu.memory_space<vmem>>, %arg14: memref<8x128xf32, #tpu.memory_space<vmem>>, %arg15: memref<8x128xf32, #tpu.memory_space<vmem>>) attributes {dimension_semantics = [#tpu.dimension_semantics<parallel>], iteration_bounds = array<i64: 1>, scalar_prefetch = 0 : i64, scratch_operands = 0 : i64, tpu.core_type = #tpu.core_type<tc>, window_params = [{transform_indices = @transform_0, window_bounds = array<i64: 8, 32>}, {pipeline_mode = #tpu.pipeline_mode<synchronous>, transform_indices = @transform_1, window_bounds = array<i64: 32, 128>}, {pipeline_mode = #tpu.pipeline_mode<synchronous>, transform_indices = @transform_2, window_bounds = array<i64: 1, 128>}, {pipeline_mode = #tpu.pipeline_mode<synchronous>, transform_indices = @transform_3, window_bounds = array<i64: 128, 128>}, {pipeline_mode = #tpu.pipeline_mode<synchronous>, transform_indices = @transform_4, window_bounds = array<i64: 1, 128>}, {pipeline_mode = #tpu.pipeline_mode<synchronous>, transform_indices = @transform_5, window_bounds = array<i64: 128, 128>}, {pipeline_mode = #tpu.pipeline_mode<synchronous>, transform_indices = @transform_6, window_bounds = array<i64: 1, 128>}, {pipeline_mode = #tpu.pipeline_mode<synchronous>, transform_indices = @transform_7, window_bounds = array<i64: 128, 128>}, {pipeline_mode = #tpu.pipeline_mode<synchronous>, transform_indices = @transform_8, window_bounds = array<i64: 1, 128>}, {pipeline_mode = #tpu.pipeline_mode<synchronous>, transform_indices = @transform_9, window_bounds = array<i64: 128, 128>}, {pipeline_mode = #tpu.pipeline_mode<synchronous>, transform_indices = @transform_10, window_bounds = array<i64: 1, 128>}, {pipeline_mode = #tpu.pipeline_mode<synchronous>, transform_indices = @transform_11, window_bounds = array<i64: 128, 128>}, {pipeline_mode = #tpu.pipeline_mode<synchronous>, transform_indices = @transform_12, window_bounds = array<i64: 1, 128>}, {transform_indices = @transform_13, window_bounds = array<i64: 8, 128>}, {transform_indices = @transform_14, window_bounds = array<i64: 8, 128>}]} {
    %c0 = arith.constant 0 : index
    %c0_0 = arith.constant 0 : index
    %0 = vector.load %arg1[%c0, %c0_0] : memref<8x32xf32, #tpu.memory_space<vmem>>, vector<8x32xf32>
    %c0_1 = arith.constant 0 : index
    %c0_2 = arith.constant 0 : index
    %1 = vector.load %arg2[%c0_1, %c0_2] : memref<32x128xf32, #tpu.memory_space<vmem>>, vector<32x128xf32>
    %c0_3 = arith.constant 0 : index
    %c0_4 = arith.constant 0 : index
    %2 = vector.load %arg3[%c0_3, %c0_4] : memref<1x128xf32, #tpu.memory_space<vmem>>, vector<1x128xf32>
    %cst = arith.constant dense<0.000000e+00> : vector<8x128xf32>
    %3 = tpu.matmul %0, %1, %cst {dimension_numbers = #tpu.dot_dimension_numbers<[1], [0], [0], [1], [0, 0, 1, 1], [], []>} : vector<8x32xf32>, vector<32x128xf32>, vector<8x128xf32> -> vector<8x128xf32>
    %4 = vector.broadcast %2 : vector<1x128xf32> to vector<8x128xf32>
    %5 = arith.addf %3, %4 : vector<8x128xf32>
    %cst_5 = arith.constant 0.000000e+00 : f32
    %6 = vector.broadcast %cst_5 : f32 to vector<8x128xf32>
    %7 = arith.maximumf %5, %6 : vector<8x128xf32>
    %c0_6 = arith.constant 0 : index
    %c0_7 = arith.constant 0 : index
    %8 = vector.load %arg4[%c0_6, %c0_7] : memref<128x128xf32, #tpu.memory_space<vmem>>, vector<128x128xf32>
    %c0_8 = arith.constant 0 : index
    %c0_9 = arith.constant 0 : index
    %9 = vector.load %arg5[%c0_8, %c0_9] : memref<1x128xf32, #tpu.memory_space<vmem>>, vector<1x128xf32>
    %cst_10 = arith.constant dense<0.000000e+00> : vector<8x128xf32>
    %10 = tpu.matmul %7, %8, %cst_10 {dimension_numbers = #tpu.dot_dimension_numbers<[1], [0], [0], [1], [0, 0, 1, 1], [], []>} : vector<8x128xf32>, vector<128x128xf32>, vector<8x128xf32> -> vector<8x128xf32>
    %11 = vector.broadcast %9 : vector<1x128xf32> to vector<8x128xf32>
    %12 = arith.addf %10, %11 : vector<8x128xf32>
    %cst_11 = arith.constant 0.000000e+00 : f32
    %13 = vector.broadcast %cst_11 : f32 to vector<8x128xf32>
    %14 = arith.maximumf %12, %13 : vector<8x128xf32>
    %c0_12 = arith.constant 0 : index
    %c0_13 = arith.constant 0 : index
    %15 = vector.load %arg6[%c0_12, %c0_13] : memref<128x128xf32, #tpu.memory_space<vmem>>, vector<128x128xf32>
    %c0_14 = arith.constant 0 : index
    %c0_15 = arith.constant 0 : index
    %16 = vector.load %arg7[%c0_14, %c0_15] : memref<1x128xf32, #tpu.memory_space<vmem>>, vector<1x128xf32>
    %cst_16 = arith.constant dense<0.000000e+00> : vector<8x128xf32>
    %17 = tpu.matmul %14, %15, %cst_16 {dimension_numbers = #tpu.dot_dimension_numbers<[1], [0], [0], [1], [0, 0, 1, 1], [], []>} : vector<8x128xf32>, vector<128x128xf32>, vector<8x128xf32> -> vector<8x128xf32>
    %18 = vector.broadcast %16 : vector<1x128xf32> to vector<8x128xf32>
    %19 = arith.addf %17, %18 : vector<8x128xf32>
    %c0_17 = arith.constant 0 : index
    %c0_18 = arith.constant 0 : index
    %20 = vector.load %arg15[%c0_17, %c0_18] : memref<8x128xf32, #tpu.memory_space<vmem>>, vector<8x128xf32>
    tpu.vector_store %arg15[%c0_17, %c0_18], %19 {strides = array<i32>} : memref<8x128xf32, #tpu.memory_space<vmem>>, vector<8x128xf32>,
    %c0_19 = arith.constant 0 : index
    %c0_20 = arith.constant 0 : index
    %21 = vector.load %arg8[%c0_19, %c0_20] : memref<128x128xf32, #tpu.memory_space<vmem>>, vector<128x128xf32>
    %c0_21 = arith.constant 0 : index
    %c0_22 = arith.constant 0 : index
    %22 = vector.load %arg9[%c0_21, %c0_22] : memref<1x128xf32, #tpu.memory_space<vmem>>, vector<1x128xf32>
    %cst_23 = arith.constant dense<0.000000e+00> : vector<8x128xf32>
    %23 = tpu.matmul %19, %21, %cst_23 {dimension_numbers = #tpu.dot_dimension_numbers<[1], [0], [0], [1], [0, 0, 1, 1], [], []>} : vector<8x128xf32>, vector<128x128xf32>, vector<8x128xf32> -> vector<8x128xf32>
    %24 = vector.broadcast %22 : vector<1x128xf32> to vector<8x128xf32>
    %25 = arith.addf %23, %24 : vector<8x128xf32>
    %cst_24 = arith.constant 0.000000e+00 : f32
    %26 = vector.broadcast %cst_24 : f32 to vector<8x128xf32>
    %27 = arith.maximumf %25, %26 : vector<8x128xf32>
    %c0_25 = arith.constant 0 : index
    %c0_26 = arith.constant 0 : index
    %28 = vector.load %arg10[%c0_25, %c0_26] : memref<128x128xf32, #tpu.memory_space<vmem>>, vector<128x128xf32>
    %c0_27 = arith.constant 0 : index
    %c0_28 = arith.constant 0 : index
    %29 = vector.load %arg11[%c0_27, %c0_28] : memref<1x128xf32, #tpu.memory_space<vmem>>, vector<1x128xf32>
    %cst_29 = arith.constant dense<0.000000e+00> : vector<8x128xf32>
    %30 = tpu.matmul %27, %28, %cst_29 {dimension_numbers = #tpu.dot_dimension_numbers<[1], [0], [0], [1], [0, 0, 1, 1], [], []>} : vector<8x128xf32>, vector<128x128xf32>, vector<8x128xf32> -> vector<8x128xf32>
    %31 = vector.broadcast %29 : vector<1x128xf32> to vector<8x128xf32>
    %32 = arith.addf %30, %31 : vector<8x128xf32>
    %cst_30 = arith.constant 0.000000e+00 : f32
    %33 = vector.broadcast %cst_30 : f32 to vector<8x128xf32>
    %34 = arith.maximumf %32, %33 : vector<8x128xf32>
    %c0_31 = arith.constant 0 : index
    %c0_32 = arith.constant 0 : index
    %35 = vector.load %arg12[%c0_31, %c0_32] : memref<128x128xf32, #tpu.memory_space<vmem>>, vector<128x128xf32>
    %c0_33 = arith.constant 0 : index
    %c0_34 = arith.constant 0 : index
    %36 = vector.load %arg13[%c0_33, %c0_34] : memref<1x128xf32, #tpu.memory_space<vmem>>, vector<1x128xf32>
    %cst_35 = arith.constant dense<0.000000e+00> : vector<8x128xf32>
    %37 = tpu.matmul %34, %35, %cst_35 {dimension_numbers = #tpu.dot_dimension_numbers<[1], [0], [0], [1], [0, 0, 1, 1], [], []>} : vector<8x128xf32>, vector<128x128xf32>, vector<8x128xf32> -> vector<8x128xf32>
    %38 = vector.broadcast %36 : vector<1x128xf32> to vector<8x128xf32>
    %39 = arith.addf %37, %38 : vector<8x128xf32>
    %c0_36 = arith.constant 0 : index
    %c0_37 = arith.constant 0 : index
    %40 = vector.load %arg14[%c0_36, %c0_37] : memref<8x128xf32, #tpu.memory_space<vmem>>, vector<8x128xf32>
    tpu.vector_store %arg14[%c0_36, %c0_37], %39 {strides = array<i32>} : memref<8x128xf32, #tpu.memory_space<vmem>>, vector<8x128xf32>,
    return
  }
  func.func @transform_0(%arg0: i32) -> (i32, i32) {
    %c0_i32 = arith.constant 0 : i32
    %c0_i32_0 = arith.constant 0 : i32
    return %arg0, %c0_i32 : i32, i32
  }
  func.func @transform_1(%arg0: i32) -> (i32, i32) {
    %c0_i32 = arith.constant 0 : i32
    %c0_i32_0 = arith.constant 0 : i32
    %c0_i32_1 = arith.constant 0 : i32
    return %c0_i32, %c0_i32_0 : i32, i32
  }
  func.func @transform_2(%arg0: i32) -> (i32, i32) {
    %c0_i32 = arith.constant 0 : i32
    %c0_i32_0 = arith.constant 0 : i32
    %c0_i32_1 = arith.constant 0 : i32
    return %c0_i32, %c0_i32_0 : i32, i32
  }
  func.func @transform_3(%arg0: i32) -> (i32, i32) {
    %c0_i32 = arith.constant 0 : i32
    %c0_i32_0 = arith.constant 0 : i32
    %c0_i32_1 = arith.constant 0 : i32
    return %c0_i32, %c0_i32_0 : i32, i32
  }
  func.func @transform_4(%arg0: i32) -> (i32, i32) {
    %c0_i32 = arith.constant 0 : i32
    %c0_i32_0 = arith.constant 0 : i32
    %c0_i32_1 = arith.constant 0 : i32
    return %c0_i32, %c0_i32_0 : i32, i32
  }
  func.func @transform_5(%arg0: i32) -> (i32, i32) {
    %c0_i32 = arith.constant 0 : i32
    %c0_i32_0 = arith.constant 0 : i32
    %c0_i32_1 = arith.constant 0 : i32
    return %c0_i32, %c0_i32_0 : i32, i32
  }
  func.func @transform_6(%arg0: i32) -> (i32, i32) {
    %c0_i32 = arith.constant 0 : i32
    %c0_i32_0 = arith.constant 0 : i32
    %c0_i32_1 = arith.constant 0 : i32
    return %c0_i32, %c0_i32_0 : i32, i32
  }
  func.func @transform_7(%arg0: i32) -> (i32, i32) {
    %c0_i32 = arith.constant 0 : i32
    %c0_i32_0 = arith.constant 0 : i32
    %c0_i32_1 = arith.constant 0 : i32
    return %c0_i32, %c0_i32_0 : i32, i32
  }
  func.func @transform_8(%arg0: i32) -> (i32, i32) {
    %c0_i32 = arith.constant 0 : i32
    %c0_i32_0 = arith.constant 0 : i32
    %c0_i32_1 = arith.constant 0 : i32
    return %c0_i32, %c0_i32_0 : i32, i32
  }
  func.func @transform_9(%arg0: i32) -> (i32, i32) {
    %c0_i32 = arith.constant 0 : i32
    %c0_i32_0 = arith.constant 0 : i32
    %c0_i32_1 = arith.constant 0 : i32
    return %c0_i32, %c0_i32_0 : i32, i32
  }
  func.func @transform_10(%arg0: i32) -> (i32, i32) {
    %c0_i32 = arith.constant 0 : i32
    %c0_i32_0 = arith.constant 0 : i32
    %c0_i32_1 = arith.constant 0 : i32
    return %c0_i32, %c0_i32_0 : i32, i32
  }
  func.func @transform_11(%arg0: i32) -> (i32, i32) {
    %c0_i32 = arith.constant 0 : i32
    %c0_i32_0 = arith.constant 0 : i32
    %c0_i32_1 = arith.constant 0 : i32
    return %c0_i32, %c0_i32_0 : i32, i32
  }
  func.func @transform_12(%arg0: i32) -> (i32, i32) {
    %c0_i32 = arith.constant 0 : i32
    %c0_i32_0 = arith.constant 0 : i32
    %c0_i32_1 = arith.constant 0 : i32
    return %c0_i32, %c0_i32_0 : i32, i32
  }
  func.func @transform_13(%arg0: i32) -> (i32, i32) {
    %c0_i32 = arith.constant 0 : i32
    %c0_i32_0 = arith.constant 0 : i32
    return %arg0, %c0_i32 : i32, i32
  }
  func.func @transform_14(%arg0: i32) -> (i32, i32) {
    %c0_i32 = arith.constant 0 : i32
    %c0_i32_0 = arith.constant 0 : i32
    return %arg0, %c0_i32 : i32, i32
  }
}

module attributes {stable_mosaic.version = 11 : i64} {
  func.func @_fused_autoenc_kernel(%arg0: i32, %arg1: memref<8x32xf32, #tpu.memory_space<vmem>>, %arg2: memref<32x128xf32, #tpu.memory_space<vmem>>, %arg3: memref<1x128xf32, #tpu.memory_space<vmem>>, %arg4: memref<128x128xf32, #tpu.memory_space<vmem>>, %arg5: memref<1x128xf32, #tpu.memory_space<vmem>>, %arg6: memref<128x128xf32, #tpu.memory_space<vmem>>, %arg7: memref<1x128xf32, #tpu.memory_space<vmem>>, %arg8: memref<128x128xf32, #tpu.memory_space<vmem>>, %arg9: memref<1x128xf32, #tpu.memory_space<vmem>>, %arg10: memref<128x128xf32, #tpu.memory_space<vmem>>, %arg11: memref<1x128xf32, #tpu.memory_space<vmem>>, %arg12: memref<128x128xf32, #tpu.memory_space<vmem>>, %arg13: memref<1x128xf32, #tpu.memory_space<vmem>>, %arg14: memref<8x128xf32, #tpu.memory_space<vmem>>, %arg15: memref<8x128xf32, #tpu.memory_space<vmem>>) attributes {dimension_semantics = [#tpu.dimension_semantics<parallel>], iteration_bounds = array<i64: 1>, scalar_prefetch = 0 : i64, scratch_operands = 0 : i64, tpu.core_type = #tpu.core_type<tc>, window_params = [{transform_indices = @transform_0, window_bounds = array<i64: 8, 32>}, {pipeline_mode = #tpu.pipeline_mode<synchronous>, transform_indices = @transform_1, window_bounds = array<i64: 32, 128>}, {pipeline_mode = #tpu.pipeline_mode<synchronous>, transform_indices = @transform_2, window_bounds = array<i64: 1, 128>}, {pipeline_mode = #tpu.pipeline_mode<synchronous>, transform_indices = @transform_3, window_bounds = array<i64: 128, 128>}, {pipeline_mode = #tpu.pipeline_mode<synchronous>, transform_indices = @transform_4, window_bounds = array<i64: 1, 128>}, {pipeline_mode = #tpu.pipeline_mode<synchronous>, transform_indices = @transform_5, window_bounds = array<i64: 128, 128>}, {pipeline_mode = #tpu.pipeline_mode<synchronous>, transform_indices = @transform_6, window_bounds = array<i64: 1, 128>}, {pipeline_mode = #tpu.pipeline_mode<synchronous>, transform_indices = @transform_7, window_bounds = array<i64: 128, 128>}, {pipeline_mode = #tpu.pipeline_mode<synchronous>, transform_indices = @transform_8, window_bounds = array<i64: 1, 128>}, {pipeline_mode = #tpu.pipeline_mode<synchronous>, transform_indices = @transform_9, window_bounds = array<i64: 128, 128>}, {pipeline_mode = #tpu.pipeline_mode<synchronous>, transform_indices = @transform_10, window_bounds = array<i64: 1, 128>}, {pipeline_mode = #tpu.pipeline_mode<synchronous>, transform_indices = @transform_11, window_bounds = array<i64: 128, 128>}, {pipeline_mode = #tpu.pipeline_mode<synchronous>, transform_indices = @transform_12, window_bounds = array<i64: 1, 128>}, {transform_indices = @transform_13, window_bounds = array<i64: 8, 128>}, {transform_indices = @transform_14, window_bounds = array<i64: 8, 128>}]} {
    %c0 = arith.constant 0 : index
    %c0_0 = arith.constant 0 : index
    %0 = vector.load %arg1[%c0, %c0_0] : memref<8x32xf32, #tpu.memory_space<vmem>>, vector<8x32xf32>
    %c0_1 = arith.constant 0 : index
    %c0_2 = arith.constant 0 : index
    %1 = vector.load %arg2[%c0_1, %c0_2] : memref<32x128xf32, #tpu.memory_space<vmem>>, vector<32x128xf32>
    %c0_3 = arith.constant 0 : index
    %c0_4 = arith.constant 0 : index
    %2 = vector.load %arg3[%c0_3, %c0_4] : memref<1x128xf32, #tpu.memory_space<vmem>>, vector<1x128xf32>
    %cst = arith.constant dense<0.000000e+00> : vector<8x128xf32>
    %3 = tpu.matmul %0, %1, %cst {dimension_numbers = #tpu.dot_dimension_numbers<[1], [0], [0], [1], [0, 0, 1, 1], [], []>} : vector<8x32xf32>, vector<32x128xf32>, vector<8x128xf32> -> vector<8x128xf32>
    %4 = vector.broadcast %2 : vector<1x128xf32> to vector<8x128xf32>
    %5 = arith.addf %3, %4 : vector<8x128xf32>
    %cst_5 = arith.constant 0.000000e+00 : f32
    %6 = vector.broadcast %cst_5 : f32 to vector<8x128xf32>
    %7 = arith.maximumf %5, %6 : vector<8x128xf32>
    %c0_6 = arith.constant 0 : index
    %c0_7 = arith.constant 0 : index
    %8 = vector.load %arg4[%c0_6, %c0_7] : memref<128x128xf32, #tpu.memory_space<vmem>>, vector<128x128xf32>
    %c0_8 = arith.constant 0 : index
    %c0_9 = arith.constant 0 : index
    %9 = vector.load %arg5[%c0_8, %c0_9] : memref<1x128xf32, #tpu.memory_space<vmem>>, vector<1x128xf32>
    %cst_10 = arith.constant dense<0.000000e+00> : vector<8x128xf32>
    %10 = tpu.matmul %7, %8, %cst_10 {dimension_numbers = #tpu.dot_dimension_numbers<[1], [0], [0], [1], [0, 0, 1, 1], [], []>} : vector<8x128xf32>, vector<128x128xf32>, vector<8x128xf32> -> vector<8x128xf32>
    %11 = vector.broadcast %9 : vector<1x128xf32> to vector<8x128xf32>
    %12 = arith.addf %10, %11 : vector<8x128xf32>
    %cst_11 = arith.constant 0.000000e+00 : f32
    %13 = vector.broadcast %cst_11 : f32 to vector<8x128xf32>
    %14 = arith.maximumf %12, %13 : vector<8x128xf32>
    %c0_12 = arith.constant 0 : index
    %c0_13 = arith.constant 0 : index
    %15 = vector.load %arg6[%c0_12, %c0_13] : memref<128x128xf32, #tpu.memory_space<vmem>>, vector<128x128xf32>
    %c0_14 = arith.constant 0 : index
    %c0_15 = arith.constant 0 : index
    %16 = vector.load %arg7[%c0_14, %c0_15] : memref<1x128xf32, #tpu.memory_space<vmem>>, vector<1x128xf32>
    %cst_16 = arith.constant dense<0.000000e+00> : vector<8x128xf32>
    %17 = tpu.matmul %14, %15, %cst_16 {dimension_numbers = #tpu.dot_dimension_numbers<[1], [0], [0], [1], [0, 0, 1, 1], [], []>} : vector<8x128xf32>, vector<128x128xf32>, vector<8x128xf32> -> vector<8x128xf32>
    %18 = vector.broadcast %16 : vector<1x128xf32> to vector<8x128xf32>
    %19 = arith.addf %17, %18 : vector<8x128xf32>
    %c0_17 = arith.constant 0 : index
    %c0_18 = arith.constant 0 : index
    %20 = vector.load %arg15[%c0_17, %c0_18] : memref<8x128xf32, #tpu.memory_space<vmem>>, vector<8x128xf32>
    tpu.vector_store %arg15[%c0_17, %c0_18], %19 {strides = array<i32>} : memref<8x128xf32, #tpu.memory_space<vmem>>, vector<8x128xf32>,
    %c0_19 = arith.constant 0 : index
    %c0_20 = arith.constant 0 : index
    %21 = vector.load %arg8[%c0_19, %c0_20] : memref<128x128xf32, #tpu.memory_space<vmem>>, vector<128x128xf32>
    %c0_21 = arith.constant 0 : index
    %c0_22 = arith.constant 0 : index
    %22 = vector.load %arg9[%c0_21, %c0_22] : memref<1x128xf32, #tpu.memory_space<vmem>>, vector<1x128xf32>
    %cst_23 = arith.constant dense<0.000000e+00> : vector<8x128xf32>
    %23 = tpu.matmul %19, %21, %cst_23 {dimension_numbers = #tpu.dot_dimension_numbers<[1], [0], [0], [1], [0, 0, 1, 1], [], []>} : vector<8x128xf32>, vector<128x128xf32>, vector<8x128xf32> -> vector<8x128xf32>
    %24 = vector.broadcast %22 : vector<1x128xf32> to vector<8x128xf32>
    %25 = arith.addf %23, %24 : vector<8x128xf32>
    %cst_24 = arith.constant 0.000000e+00 : f32
    %26 = vector.broadcast %cst_24 : f32 to vector<8x128xf32>
    %27 = arith.maximumf %25, %26 : vector<8x128xf32>
    %c0_25 = arith.constant 0 : index
    %c0_26 = arith.constant 0 : index
    %28 = vector.load %arg10[%c0_25, %c0_26] : memref<128x128xf32, #tpu.memory_space<vmem>>, vector<128x128xf32>
    %c0_27 = arith.constant 0 : index
    %c0_28 = arith.constant 0 : index
    %29 = vector.load %arg11[%c0_27, %c0_28] : memref<1x128xf32, #tpu.memory_space<vmem>>, vector<1x128xf32>
    %cst_29 = arith.constant dense<0.000000e+00> : vector<8x128xf32>
    %30 = tpu.matmul %27, %28, %cst_29 {dimension_numbers = #tpu.dot_dimension_numbers<[1], [0], [0], [1], [0, 0, 1, 1], [], []>} : vector<8x128xf32>, vector<128x128xf32>, vector<8x128xf32> -> vector<8x128xf32>
    %31 = vector.broadcast %29 : vector<1x128xf32> to vector<8x128xf32>
    %32 = arith.addf %30, %31 : vector<8x128xf32>
    %cst_30 = arith.constant 0.000000e+00 : f32
    %33 = vector.broadcast %cst_30 : f32 to vector<8x128xf32>
    %34 = arith.maximumf %32, %33 : vector<8x128xf32>
    %c0_31 = arith.constant 0 : index
    %c0_32 = arith.constant 0 : index
    %35 = vector.load %arg12[%c0_31, %c0_32] : memref<128x128xf32, #tpu.memory_space<vmem>>, vector<128x128xf32>
    %c0_33 = arith.constant 0 : index
    %c0_34 = arith.constant 0 : index
    %36 = vector.load %arg13[%c0_33, %c0_34] : memref<1x128xf32, #tpu.memory_space<vmem>>, vector<1x128xf32>
    %cst_35 = arith.constant dense<0.000000e+00> : vector<8x128xf32>
    %37 = tpu.matmul %34, %35, %cst_35 {dimension_numbers = #tpu.dot_dimension_numbers<[1], [0], [0], [1], [0, 0, 1, 1], [], []>} : vector<8x128xf32>, vector<128x128xf32>, vector<8x128xf32> -> vector<8x128xf32>
    %38 = vector.broadcast %36 : vector<1x128xf32> to vector<8x128xf32>
    %39 = arith.addf %37, %38 : vector<8x128xf32>
    %c0_36 = arith.constant 0 : index
    %c0_37 = arith.constant 0 : index
    %40 = vector.load %arg14[%c0_36, %c0_37] : memref<8x128xf32, #tpu.memory_space<vmem>>, vector<8x128xf32>
    tpu.vector_store %arg14[%c0_36, %c0_37], %39 {strides = array<i32>} : memref<8x128xf32, #tpu.memory_space<vmem>>, vector<8x128xf32>,
    return
  }
  func.func @transform_0(%arg0: i32) -> (i32, i32) {
    %c0_i32 = arith.constant 0 : i32
    %c0_i32_0 = arith.constant 0 : i32
    return %arg0, %c0_i32 : i32, i32
  }
  func.func @transform_1(%arg0: i32) -> (i32, i32) {
    %c0_i32 = arith.constant 0 : i32
    %c0_i32_0 = arith.constant 0 : i32
    %c0_i32_1 = arith.constant 0 : i32
    return %c0_i32, %c0_i32_0 : i32, i32
  }
  func.func @transform_2(%arg0: i32) -> (i32, i32) {
    %c0_i32 = arith.constant 0 : i32
    %c0_i32_0 = arith.constant 0 : i32
    %c0_i32_1 = arith.constant 0 : i32
    return %c0_i32, %c0_i32_0 : i32, i32
  }
  func.func @transform_3(%arg0: i32) -> (i32, i32) {
    %c0_i32 = arith.constant 0 : i32
    %c0_i32_0 = arith.constant 0 : i32
    %c0_i32_1 = arith.constant 0 : i32
    return %c0_i32, %c0_i32_0 : i32, i32
  }
  func.func @transform_4(%arg0: i32) -> (i32, i32) {
    %c0_i32 = arith.constant 0 : i32
    %c0_i32_0 = arith.constant 0 : i32
    %c0_i32_1 = arith.constant 0 : i32
    return %c0_i32, %c0_i32_0 : i32, i32
  }
  func.func @transform_5(%arg0: i32) -> (i32, i32) {
    %c0_i32 = arith.constant 0 : i32
    %c0_i32_0 = arith.constant 0 : i32
    %c0_i32_1 = arith.constant 0 : i32
    return %c0_i32, %c0_i32_0 : i32, i32
  }
  func.func @transform_6(%arg0: i32) -> (i32, i32) {
    %c0_i32 = arith.constant 0 : i32
    %c0_i32_0 = arith.constant 0 : i32
    %c0_i32_1 = arith.constant 0 : i32
    return %c0_i32, %c0_i32_0 : i32, i32
  }
  func.func @transform_7(%arg0: i32) -> (i32, i32) {
    %c0_i32 = arith.constant 0 : i32
    %c0_i32_0 = arith.constant 0 : i32
    %c0_i32_1 = arith.constant 0 : i32
    return %c0_i32, %c0_i32_0 : i32, i32
  }
  func.func @transform_8(%arg0: i32) -> (i32, i32) {
    %c0_i32 = arith.constant 0 : i32
    %c0_i32_0 = arith.constant 0 : i32
    %c0_i32_1 = arith.constant 0 : i32
    return %c0_i32, %c0_i32_0 : i32, i32
  }
  func.func @transform_9(%arg0: i32) -> (i32, i32) {
    %c0_i32 = arith.constant 0 : i32
    %c0_i32_0 = arith.constant 0 : i32
    %c0_i32_1 = arith.constant 0 : i32
    return %c0_i32, %c0_i32_0 : i32, i32
  }
  func.func @transform_10(%arg0: i32) -> (i32, i32) {
    %c0_i32 = arith.constant 0 : i32
    %c0_i32_0 = arith.constant 0 : i32
    %c0_i32_1 = arith.constant 0 : i32
    return %c0_i32, %c0_i32_0 : i32, i32
  }
  func.func @transform_11(%arg0: i32) -> (i32, i32) {
    %c0_i32 = arith.constant 0 : i32
    %c0_i32_0 = arith.constant 0 : i32
    %c0_i32_1 = arith.constant 0 : i32
    return %c0_i32, %c0_i32_0 : i32, i32
  }
  func.func @transform_12(%arg0: i32) -> (i32, i32) {
    %c0_i32 = arith.constant 0 : i32
    %c0_i32_0 = arith.constant 0 : i32
    %c0_i32_1 = arith.constant 0 : i32
    return %c0_i32, %c0_i32_0 : i32, i32
  }
  func.func @transform_13(%arg0: i32) -> (i32, i32) {
    %c0_i32 = arith.constant 0 : i32
    %c0_i32_0 = arith.constant 0 : i32
    return %arg0, %c0_i32 : i32, i32
  }
  func.func @transform_14(%arg0: i32) -> (i32, i32) {
    %c0_i32 = arith.constant 0 : i32
    %c0_i32_0 = arith.constant 0 : i32
    return %arg0, %c0_i32 : i32, i32
  }
}

</mosaic_0001>

<llo_original>
// kernel: tpu_custom_call.1
$region0: #{tpu_custom_call.1}
  #allocation0 [shape = 'u32[]', space=smem, size = 0x4, offset = 0x4, fixed_abs, tag = 'smem constant byte address 0x4 - core index']
  #allocation1 [shape = 'u32[72,128]{1,0:T(1,128)}', space=vmem, size = 0x9000, scoped, tag = 'internal scratch']
  %s0 = inlined_call_operand.hbm [shape: f32[8,32], index: 0, kind: input, shape index: {}]
  %s1 = inlined_call_operand.hbm [shape: f32[32,128], index: 1, kind: input, shape index: {}]
  %s2 = inlined_call_operand.vmem [shape: f32[1,128], index: 2, kind: input, shape index: {}]
  %s3 = inlined_call_operand.hbm [shape: f32[128,128], index: 3, kind: input, shape index: {}]
  %s4 = inlined_call_operand.vmem [shape: f32[1,128], index: 4, kind: input, shape index: {}]
  %s5 = inlined_call_operand.hbm [shape: f32[128,128], index: 5, kind: input, shape index: {}]
  %s6 = inlined_call_operand.vmem [shape: f32[1,128], index: 6, kind: input, shape index: {}]
  %s7 = inlined_call_operand.hbm [shape: f32[128,128], index: 7, kind: input, shape index: {}]
  %s8 = inlined_call_operand.vmem [shape: f32[1,128], index: 8, kind: input, shape index: {}]
  %s9 = inlined_call_operand.hbm [shape: f32[128,128], index: 9, kind: input, shape index: {}]
  %s10 = inlined_call_operand.vmem [shape: f32[1,128], index: 10, kind: input, shape index: {}]
  %s11 = inlined_call_operand.hbm [shape: f32[128,128], index: 11, kind: input, shape index: {}]
  %s12 = inlined_call_operand.vmem [shape: f32[1,128], index: 12, kind: input, shape index: {}]
  %s13 = inlined_call_operand.hbm [shape: f32[8,128], index: 13, kind: output, shape index: {0}]
  %s14 = inlined_call_operand.hbm [shape: f32[8,128], index: 14, kind: output, shape index: {1}]
  %15 = xla_tuple %s13, %s14
  %s16 = sld [smem:[#allocation0]]
  $region98: #{tpu_custom_call.1} parent=0
    _
  %s18 = ssub.s32 1, %s16
  %s19 = scalar_select 0, %s18, %s16
  $region1: #{tpu_custom_call.1} parent=0
    #allocation2 [shape = 'u8[4096]{0}', space=vmem, size = 0x1000, scoped, tag = 'input window, operand 0, single buffered']
    #allocation3 [shape = 's32[1]{0}', space=sflag, size = 0x4, scoped, tag = 'scoped memory for tpu_custom_call.1']
    #allocation4 [shape = 's32[1]{0}', space=sflag, size = 0x4, scoped, tag = 'scoped memory for tpu_custom_call.1']
    #allocation5 [shape = 'u8[16384]{0}', space=vmem, size = 0x4000, scoped, tag = 'input window, operand 1, single buffered']
    #allocation6 [shape = 's32[1]{0}', space=sflag, size = 0x4, scoped, tag = 'scoped memory for tpu_custom_call.1']
    #allocation7 [shape = 'u8[65536]{0}', space=vmem, size = 0x10000, scoped, tag = 'input window, operand 3, single buffered']
    #allocation8 [shape = 'u8[65536]{0}', space=vmem, size = 0x10000, scoped, tag = 'input window, operand 5, single buffered']
    #allocation9 [shape = 's32[1]{0}', space=sflag, size = 0x4, scoped, tag = 'scoped memory for tpu_custom_call.1']
    #allocation10 [shape = 'u8[65536]{0}', space=vmem, size = 0x10000, scoped, tag = 'input window, operand 7, single buffered']
    #allocation11 [shape = 'u8[65536]{0}', space=vmem, size = 0x10000, scoped, tag = 'input window, operand 9, single buffered']
    #allocation12 [shape = 's32[1]{0}', space=sflag, size = 0x4, scoped, tag = 'scoped memory for tpu_custom_call.1']
    #allocation13 [shape = 'u8[65536]{0}', space=vmem, size = 0x10000, scoped, tag = 'input window, operand 11, single buffered']
    #allocation14 [shape = 'u8[4096]{0}', space=vmem, size = 0x1000, scoped, tag = 'output window, operand 0, single buffered']
    #allocation15 [shape = 'u8[4096]{0}', space=vmem, size = 0x1000, scoped, tag = 'output window, operand 1, single buffered']
    #allocation16 [shape = 's32[1]{0}', space=sflag, size = 0x4, scoped, tag = 'scoped memory for tpu_custom_call.1']
    %20 = vsyncpa [#allocation3], 0
    %21 = vsyncpa [#allocation6], 0
    %22 = vsyncpa [#allocation9], 0
    %23 = vsyncpa [#allocation12], 0
    %24 = vsyncpa [#allocation4], 0
    %25 = vsyncpa [#allocation16], 0
    // Predicated region
    $region2: #{tpu_custom_call.1} parent=1 // pred_check
      _
    $region3: #{tpu_custom_call.1} parent=1 // pred_check_branch
      %27 = sbr.rel (0) target = $region5
    $region4: #{tpu_custom_call.1} parent=1 // pred_region
      %29 = vsyncadd [#allocation3], 0
      %s31 = sshll.u32 %s0, 4
      %s32 = int_to_ptr.hbm [resolvable:$true] %s31
      %s33 = sshll.u32 [#allocation2], 4
      %s34 = int_to_ptr.vmem [resolvable:$true] %s33
      %36 = dma.hbm_to_vmem [thread:$0]  %s32, 128, %s34, [#allocation3]
    $region5: #{tpu_custom_call.1} parent=1 // pred_fallthru
      _
    // Predicated region
    $region6: #{tpu_custom_call.1} parent=1 // pred_check
      _
    $region7: #{tpu_custom_call.1} parent=1 // pred_check_branch
      %38 = sbr.rel (0) target = $region9
    $region8: #{tpu_custom_call.1} parent=1 // pred_region
      %40 = vsyncadd [#allocation6], 0
      %s41 = sshll.u32 %s1, 4
      %s42 = int_to_ptr.hbm [resolvable:$true] %s41
      %s43 = sshll.u32 [#allocation5], 4
      %s44 = int_to_ptr.vmem [resolvable:$true] %s43
      %49 = dma.hbm_to_vmem [thread:$0]  %s42, 512, %s44, [#allocation6], 128, 128, 8
    $region9: #{tpu_custom_call.1} parent=1 // pred_fallthru
      _
    // Predicated region
    $region10: #{tpu_custom_call.1} parent=1 // pred_check
      _
    $region11: #{tpu_custom_call.1} parent=1 // pred_check_branch
      %51 = sbr.rel (0) target = $region13
    $region12: #{tpu_custom_call.1} parent=1 // pred_region
      _
    $region13: #{tpu_custom_call.1} parent=1 // pred_fallthru
      _
    // Predicated region
    $region14: #{tpu_custom_call.1} parent=1 // pred_check
      _
    $region15: #{tpu_custom_call.1} parent=1 // pred_check_branch
      %53 = sbr.rel (0) target = $region17
    $region16: #{tpu_custom_call.1} parent=1 // pred_region
      %55 = vsyncadd [#allocation6], 0
      %s56 = sshll.u32 %s3, 4
      %s57 = int_to_ptr.hbm [resolvable:$true] %s56
      %s58 = sshll.u32 [#allocation7], 4
      %s59 = int_to_ptr.vmem [resolvable:$true] %s58
      %64 = dma.hbm_to_vmem [thread:$0]  %s57, 2048, %s59, [#allocation6], 128, 128, 8
    $region17: #{tpu_custom_call.1} parent=1 // pred_fallthru
      _
    // Predicated region
    $region18: #{tpu_custom_call.1} parent=1 // pred_check
      _
    $region19: #{tpu_custom_call.1} parent=1 // pred_check_branch
      %66 = sbr.rel (0) target = $region21
    $region20: #{tpu_custom_call.1} parent=1 // pred_region
      _
    $region21: #{tpu_custom_call.1} parent=1 // pred_fallthru
      _
    // Predicated region
    $region22: #{tpu_custom_call.1} parent=1 // pred_check
      _
    $region23: #{tpu_custom_call.1} parent=1 // pred_check_branch
      %68 = sbr.rel (0) target = $region25
    $region24: #{tpu_custom_call.1} parent=1 // pred_region
      %70 = vsyncadd [#allocation9], 0
      %s71 = sshll.u32 %s5, 4
      %s72 = int_to_ptr.hbm [resolvable:$true] %s71
      %s73 = sshll.u32 [#allocation8], 4
      %s74 = int_to_ptr.vmem [resolvable:$true] %s73
      %79 = dma.hbm_to_vmem [thread:$0]  %s72, 2048, %s74, [#allocation9], 128, 128, 8
    $region25: #{tpu_custom_call.1} parent=1 // pred_fallthru
      _
    // Predicated region
    $region26: #{tpu_custom_call.1} parent=1 // pred_check
      _
    $region27: #{tpu_custom_call.1} parent=1 // pred_check_branch
      %81 = sbr.rel (0) target = $region29
    $region28: #{tpu_custom_call.1} parent=1 // pred_region
      _
    $region29: #{tpu_custom_call.1} parent=1 // pred_fallthru
      _
    // Predicated region
    $region30: #{tpu_custom_call.1} parent=1 // pred_check
      _
    $region31: #{tpu_custom_call.1} parent=1 // pred_check_branch
      %83 = sbr.rel (0) target = $region33
    $region32: #{tpu_custom_call.1} parent=1 // pred_region
      %85 = vsyncadd [#allocation9], 0
      %s86 = sshll.u32 %s7, 4
      %s87 = int_to_ptr.hbm [resolvable:$true] %s86
      %s88 = sshll.u32 [#allocation10], 4
      %s89 = int_to_ptr.vmem [resolvable:$true] %s88
      %94 = dma.hbm_to_vmem [thread:$0]  %s87, 2048, %s89, [#allocation9], 128, 128, 8
    $region33: #{tpu_custom_call.1} parent=1 // pred_fallthru
      _
    // Predicated region
    $region34: #{tpu_custom_call.1} parent=1 // pred_check
      _
    $region35: #{tpu_custom_call.1} parent=1 // pred_check_branch
      %96 = sbr.rel (0) target = $region37
    $region36: #{tpu_custom_call.1} parent=1 // pred_region
      _
    $region37: #{tpu_custom_call.1} parent=1 // pred_fallthru
      _
    // Predicated region
    $region38: #{tpu_custom_call.1} parent=1 // pred_check
      _
    $region39: #{tpu_custom_call.1} parent=1 // pred_check_branch
      %98 = sbr.rel (0) target = $region41
    $region40: #{tpu_custom_call.1} parent=1 // pred_region
      %100 = vsyncadd [#allocation12], 0
      %s101 = sshll.u32 %s9, 4
      %s102 = int_to_ptr.hbm [resolvable:$true] %s101
      %s103 = sshll.u32 [#allocation11], 4
      %s104 = int_to_ptr.vmem [resolvable:$true] %s103
      %109 = dma.hbm_to_vmem [thread:$0]  %s102, 2048, %s104, [#allocation12], 128, 128, 8
    $region41: #{tpu_custom_call.1} parent=1 // pred_fallthru
      _
    // Predicated region
    $region42: #{tpu_custom_call.1} parent=1 // pred_check
      _
    $region43: #{tpu_custom_call.1} parent=1 // pred_check_branch
      %111 = sbr.rel (0) target = $region45
    $region44: #{tpu_custom_call.1} parent=1 // pred_region
      _
    $region45: #{tpu_custom_call.1} parent=1 // pred_fallthru
      _
    // Predicated region
    $region46: #{tpu_custom_call.1} parent=1 // pred_check
      _
    $region47: #{tpu_custom_call.1} parent=1 // pred_check_branch
      %113 = sbr.rel (0) target = $region49
    $region48: #{tpu_custom_call.1} parent=1 // pred_region
      %115 = vsyncadd [#allocation12], 0
      %s116 = sshll.u32 %s11, 4
      %s117 = int_to_ptr.hbm [resolvable:$true] %s116
      %s118 = sshll.u32 [#allocation13], 4
      %s119 = int_to_ptr.vmem [resolvable:$true] %s118
      %124 = dma.hbm_to_vmem [thread:$0]  %s117, 2048, %s119, [#allocation12], 128, 128, 8
    $region49: #{tpu_custom_call.1} parent=1 // pred_fallthru
      _
    // Predicated region
    $region50: #{tpu_custom_call.1} parent=1 // pred_check
      _
    $region51: #{tpu_custom_call.1} parent=1 // pred_check_branch
      %126 = sbr.rel (0) target = $region53
    $region52: #{tpu_custom_call.1} parent=1 // pred_region
      _
    $region53: #{tpu_custom_call.1} parent=1 // pred_fallthru
      _
    // Predicated region
    $region54: #{tpu_custom_call.1} parent=1 // pred_check
      _
    $region55: #{tpu_custom_call.1} parent=1 // pred_check_branch
      %128 = sbr.rel (0) target = $region57
    $region56: #{tpu_custom_call.1} parent=1 // pred_region
      %130 = dma.done [#allocation3], 128
    $region57: #{tpu_custom_call.1} parent=1 // pred_fallthru
      _
    // Predicated region
    $region58: #{tpu_custom_call.1} parent=1 // pred_check
      _
    $region59: #{tpu_custom_call.1} parent=1 // pred_check_branch
      %132 = sbr.rel (0) target = $region61
    $region60: #{tpu_custom_call.1} parent=1 // pred_region
      %134 = dma.done [#allocation6], 512
    $region61: #{tpu_custom_call.1} parent=1 // pred_fallthru
      _
    // Predicated region
    $region62: #{tpu_custom_call.1} parent=1 // pred_check
      _
    $region63: #{tpu_custom_call.1} parent=1 // pred_check_branch
      %136 = sbr.rel (0) target = $region65
    $region64: #{tpu_custom_call.1} parent=1 // pred_region
      %138 = dma.done [#allocation6], 2048
    $region65: #{tpu_custom_call.1} parent=1 // pred_fallthru
      _
    // Predicated region
    $region66: #{tpu_custom_call.1} parent=1 // pred_check
      _
    $region67: #{tpu_custom_call.1} parent=1 // pred_check_branch
      %140 = sbr.rel (0) target = $region69
    $region68: #{tpu_custom_call.1} parent=1 // pred_region
      %142 = dma.done [#allocation9], 2048
    $region69: #{tpu_custom_call.1} parent=1 // pred_fallthru
      _
    // Predicated region
    $region70: #{tpu_custom_call.1} parent=1 // pred_check
      _
    $region71: #{tpu_custom_call.1} parent=1 // pred_check_branch
      %144 = sbr.rel (0) target = $region73
    $region72: #{tpu_custom_call.1} parent=1 // pred_region
      %146 = dma.done [#allocation9], 2048
    $region73: #{tpu_custom_call.1} parent=1 // pred_fallthru
      _
    // Predicated region
    $region74: #{tpu_custom_call.1} parent=1 // pred_check
      _
    $region75: #{tpu_custom_call.1} parent=1 // pred_check_branch
      %148 = sbr.rel (0) target = $region77
    $region76: #{tpu_custom_call.1} parent=1 // pred_region
      %150 = dma.done [#allocation12], 2048
    $region77: #{tpu_custom_call.1} parent=1 // pred_fallthru
      _
    // Predicated region
    $region78: #{tpu_custom_call.1} parent=1 // pred_check
      _
    $region79: #{tpu_custom_call.1} parent=1 // pred_check_branch
      %152 = sbr.rel (0) target = $region81
    $region80: #{tpu_custom_call.1} parent=1 // pred_region
      %154 = dma.done [#allocation12], 2048
    $region81: #{tpu_custom_call.1} parent=1 // pred_fallthru
      _
    %v155 = vld [vmem:[#allocation2] sm:$0xff]
    %v156 = vld [vmem:[#allocation5] sm:$0xff]
    %v157 = vld [vmem:[#allocation5 + $0x8] sm:$0xff]
    %v158 = vld [vmem:[#allocation5 + $0x10] sm:$0xff]
    %v159 = vld [vmem:[#allocation5 + $0x18] sm:$0xff]
    %v160 = vld [vmem:[%s2] sm:$0x1]
    %v162 = vperm.slane %v160, 0
    %vm164 = vcmask 261120
    %v166 = vsel %vm164, %v155, 0
    %168 = vmatpush.msra.mxu0 0.0
    %169 = vmatpush.msra.mxu0 0.0
    %170 = vmatpush.msra.mxu0 0.0
    %171 = vmatpush.msra.mxu0 0.0
    %172 = vmatpush.msra.mxu0 0.0
    %173 = vmatpush.msra.mxu0 0.0
    %174 = vmatpush.msra.mxu0 0.0
    %175 = vmatpush.msra.mxu0 0.0
    %176 = vmatpush.msra.mxu0 0.0
    %177 = vmatpush.msra.mxu0 0.0
    %178 = vmatpush.msra.mxu0 0.0
    %179 = vmatpush.msra.mxu0 0.0
    %180 = vmatpush.msra.mxu0 %v159
    %181 = vmatpush.msra.mxu0 %v158
    %182 = vmatpush.msra.mxu0 %v157
    %183 = vmatpush.msra.mxu0 %v156
    %184 = vmatmul.f32.gmra.mxu0 %v166
    %v185 = vpop.f32.mrf.mxu0
    %v186 = vadd.f32 %v162, %v185
    %187 = vdwg.mxu0
    %v188 = vmax.f32 %v186, 0.0
    %v189 = vld [vmem:[#allocation7] sm:$0xff]
    %v190 = vld [vmem:[#allocation7 + $0x8] sm:$0xff]
    %v191 = vld [vmem:[#allocation7 + $0x10] sm:$0xff]
    %v192 = vld [vmem:[#allocation7 + $0x18] sm:$0xff]
    %v193 = vld [vmem:[#allocation7 + $0x20] sm:$0xff]
    %v194 = vld [vmem:[#allocation7 + $0x28] sm:$0xff]
    %v195 = vld [vmem:[#allocation7 + $0x30] sm:$0xff]
    %v196 = vld [vmem:[#allocation7 + $0x38] sm:$0xff]
    %v197 = vld [vmem:[#allocation7 + $0x40] sm:$0xff]
    %v198 = vld [vmem:[#allocation7 + $0x48] sm:$0xff]
    %v199 = vld [vmem:[#allocation7 + $0x50] sm:$0xff]
    %v200 = vld [vmem:[#allocation7 + $0x58] sm:$0xff]
    %v201 = vld [vmem:[#allocation7 + $0x60] sm:$0xff]
    %v202 = vld [vmem:[#allocation7 + $0x68] sm:$0xff]
    %v203 = vld [vmem:[#allocation7 + $0x70] sm:$0xff]
    %v204 = vld [vmem:[#allocation7 + $0x78] sm:$0xff]
    %v205 = vld [vmem:[%s4] sm:$0x1]
    %v207 = vperm.slane %v205, 0
    %209 = vmatpush.msra.mxu0 %v204
    %210 = vmatpush.msra.mxu0 %v203
    %211 = vmatpush.msra.mxu0 %v202
    %212 = vmatpush.msra.mxu0 %v201
    %213 = vmatpush.msra.mxu0 %v200
    %214 = vmatpush.msra.mxu0 %v199
    %215 = vmatpush.msra.mxu0 %v198
    %216 = vmatpush.msra.mxu0 %v197
    %217 = vmatpush.msra.mxu0 %v196
    %218 = vmatpush.msra.mxu0 %v195
    %219 = vmatpush.msra.mxu0 %v194
    %220 = vmatpush.msra.mxu0 %v193
    %221 = vmatpush.msra.mxu0 %v192
    %222 = vmatpush.msra.mxu0 %v191
    %223 = vmatpush.msra.mxu0 %v190
    %224 = vmatpush.msra.mxu0 %v189
    %225 = vmatmul.f32.gmra.mxu0 %v188
    %v226 = vpop.f32.mrf.mxu0
    %v227 = vadd.f32 %v207, %v226
    %228 = vdwg.mxu0
    %v229 = vmax.f32 %v227, 0.0
    %v230 = vld [vmem:[#allocation8] sm:$0xff]
    %v231 = vld [vmem:[#allocation8 + $0x8] sm:$0xff]
    %v232 = vld [vmem:[#allocation8 + $0x10] sm:$0xff]
    %v233 = vld [vmem:[#allocation8 + $0x18] sm:$0xff]
    %v234 = vld [vmem:[#allocation8 + $0x20] sm:$0xff]
    %v235 = vld [vmem:[#allocation8 + $0x28] sm:$0xff]
    %v236 = vld [vmem:[#allocation8 + $0x30] sm:$0xff]
    %v237 = vld [vmem:[#allocation8 + $0x38] sm:$0xff]
    %v238 = vld [vmem:[#allocation8 + $0x40] sm:$0xff]
    %v239 = vld [vmem:[#allocation8 + $0x48] sm:$0xff]
    %v240 = vld [vmem:[#allocation8 + $0x50] sm:$0xff]
    %v241 = vld [vmem:[#allocation8 + $0x58] sm:$0xff]
    %v242 = vld [vmem:[#allocation8 + $0x60] sm:$0xff]
    %v243 = vld [vmem:[#allocation8 + $0x68] sm:$0xff]
    %v244 = vld [vmem:[#allocation8 + $0x70] sm:$0xff]
    %v245 = vld [vmem:[#allocation8 + $0x78] sm:$0xff]
    %v246 = vld [vmem:[%s6] sm:$0x1]
    %v248 = vperm.slane %v246, 0
    %250 = vmatpush.msra.mxu0 %v245
    %251 = vmatpush.msra.mxu0 %v244
    %252 = vmatpush.msra.mxu0 %v243
    %253 = vmatpush.msra.mxu0 %v242
    %254 = vmatpush.msra.mxu0 %v241
    %255 = vmatpush.msra.mxu0 %v240
    %256 = vmatpush.msra.mxu0 %v239
    %257 = vmatpush.msra.mxu0 %v238
    %258 = vmatpush.msra.mxu0 %v237
    %259 = vmatpush.msra.mxu0 %v236
    %260 = vmatpush.msra.mxu0 %v235
    %261 = vmatpush.msra.mxu0 %v234
    %262 = vmatpush.msra.mxu0 %v233
    %263 = vmatpush.msra.mxu0 %v232
    %264 = vmatpush.msra.mxu0 %v231
    %265 = vmatpush.msra.mxu0 %v230
    %266 = vmatmul.f32.gmra.mxu0 %v229
    %v267 = vpop.f32.mrf.mxu0
    %v268 = vadd.f32 %v248, %v267
    %269 = vdwg.mxu0
    %270 = vst [vmem:[#allocation15] sm:$0xff] %v268
    %v271 = vld [vmem:[#allocation10] sm:$0xff]
    %v272 = vld [vmem:[#allocation10 + $0x8] sm:$0xff]
    %v273 = vld [vmem:[#allocation10 + $0x10] sm:$0xff]
    %v274 = vld [vmem:[#allocation10 + $0x18] sm:$0xff]
    %v275 = vld [vmem:[#allocation10 + $0x20] sm:$0xff]
    %v276 = vld [vmem:[#allocation10 + $0x28] sm:$0xff]
    %v277 = vld [vmem:[#allocation10 + $0x30] sm:$0xff]
    %v278 = vld [vmem:[#allocation10 + $0x38] sm:$0xff]
    %v279 = vld [vmem:[#allocation10 + $0x40] sm:$0xff]
    %v280 = vld [vmem:[#allocation10 + $0x48] sm:$0xff]
    %v281 = vld [vmem:[#allocation10 + $0x50] sm:$0xff]
    %v282 = vld [vmem:[#allocation10 + $0x58] sm:$0xff]
    %v283 = vld [vmem:[#allocation10 + $0x60] sm:$0xff]
    %v284 = vld [vmem:[#allocation10 + $0x68] sm:$0xff]
    %v285 = vld [vmem:[#allocation10 + $0x70] sm:$0xff]
    %v286 = vld [vmem:[#allocation10 + $0x78] sm:$0xff]
    %v287 = vld [vmem:[%s8] sm:$0x1]
    %v289 = vperm.slane %v287, 0
    %291 = vmatpush.msra.mxu0 %v286
    %292 = vmatpush.msra.mxu0 %v285
    %293 = vmatpush.msra.mxu0 %v284
    %294 = vmatpush.msra.mxu0 %v283
    %295 = vmatpush.msra.mxu0 %v282
    %296 = vmatpush.msra.mxu0 %v281
    %297 = vmatpush.msra.mxu0 %v280
    %298 = vmatpush.msra.mxu0 %v279
    %299 = vmatpush.msra.mxu0 %v278
    %300 = vmatpush.msra.mxu0 %v277
    %301 = vmatpush.msra.mxu0 %v276
    %302 = vmatpush.msra.mxu0 %v275
    %303 = vmatpush.msra.mxu0 %v274
    %304 = vmatpush.msra.mxu0 %v273
    %305 = vmatpush.msra.mxu0 %v272
    %306 = vmatpush.msra.mxu0 %v271
    %307 = vmatmul.f32.gmra.mxu0 %v268
    %v308 = vpop.f32.mrf.mxu0
    %v309 = vadd.f32 %v289, %v308
    %310 = vdwg.mxu0
    %v311 = vmax.f32 %v309, 0.0
    %v312 = vld [vmem:[#allocation11] sm:$0xff]
    %v313 = vld [vmem:[#allocation11 + $0x8] sm:$0xff]
    %v314 = vld [vmem:[#allocation11 + $0x10] sm:$0xff]
    %v315 = vld [vmem:[#allocation11 + $0x18] sm:$0xff]
    %v316 = vld [vmem:[#allocation11 + $0x20] sm:$0xff]
    %v317 = vld [vmem:[#allocation11 + $0x28] sm:$0xff]
    %v318 = vld [vmem:[#allocation11 + $0x30] sm:$0xff]
    %v319 = vld [vmem:[#allocation11 + $0x38] sm:$0xff]
    %v320 = vld [vmem:[#allocation11 + $0x40] sm:$0xff]
    %v321 = vld [vmem:[#allocation11 + $0x48] sm:$0xff]
    %v322 = vld [vmem:[#allocation11 + $0x50] sm:$0xff]
    %v323 = vld [vmem:[#allocation11 + $0x58] sm:$0xff]
    %v324 = vld [vmem:[#allocation11 + $0x60] sm:$0xff]
    %v325 = vld [vmem:[#allocation11 + $0x68] sm:$0xff]
    %v326 = vld [vmem:[#allocation11 + $0x70] sm:$0xff]
    %v327 = vld [vmem:[#allocation11 + $0x78] sm:$0xff]
    %v328 = vld [vmem:[%s10] sm:$0x1]
    %v330 = vperm.slane %v328, 0
    %332 = vmatpush.msra.mxu0 %v327
    %333 = vmatpush.msra.mxu0 %v326
    %334 = vmatpush.msra.mxu0 %v325
    %335 = vmatpush.msra.mxu0 %v324
    %336 = vmatpush.msra.mxu0 %v323
    %337 = vmatpush.msra.mxu0 %v322
    %338 = vmatpush.msra.mxu0 %v321
    %339 = vmatpush.msra.mxu0 %v320
    %340 = vmatpush.msra.mxu0 %v319
    %341 = vmatpush.msra.mxu0 %v318
    %342 = vmatpush.msra.mxu0 %v317
    %343 = vmatpush.msra.mxu0 %v316
    %344 = vmatpush.msra.mxu0 %v315
    %345 = vmatpush.msra.mxu0 %v314
    %346 = vmatpush.msra.mxu0 %v313
    %347 = vmatpush.msra.mxu0 %v312
    %348 = vmatmul.f32.gmra.mxu0 %v311
    %v349 = vpop.f32.mrf.mxu0
    %v350 = vadd.f32 %v330, %v349
    %351 = vdwg.mxu0
    %v352 = vmax.f32 %v350, 0.0
    %v353 = vld [vmem:[#allocation13] sm:$0xff]
    %v354 = vld [vmem:[#allocation13 + $0x8] sm:$0xff]
    %v355 = vld [vmem:[#allocation13 + $0x10] sm:$0xff]
    %v356 = vld [vmem:[#allocation13 + $0x18] sm:$0xff]
    %v357 = vld [vmem:[#allocation13 + $0x20] sm:$0xff]
    %v358 = vld [vmem:[#allocation13 + $0x28] sm:$0xff]
    %v359 = vld [vmem:[#allocation13 + $0x30] sm:$0xff]
    %v360 = vld [vmem:[#allocation13 + $0x38] sm:$0xff]
    %v361 = vld [vmem:[#allocation13 + $0x40] sm:$0xff]
    %v362 = vld [vmem:[#allocation13 + $0x48] sm:$0xff]
    %v363 = vld [vmem:[#allocation13 + $0x50] sm:$0xff]
    %v364 = vld [vmem:[#allocation13 + $0x58] sm:$0xff]
    %v365 = vld [vmem:[#allocation13 + $0x60] sm:$0xff]
    %v366 = vld [vmem:[#allocation13 + $0x68] sm:$0xff]
    %v367 = vld [vmem:[#allocation13 + $0x70] sm:$0xff]
    %v368 = vld [vmem:[#allocation13 + $0x78] sm:$0xff]
    %v369 = vld [vmem:[%s12] sm:$0x1]
    %v371 = vperm.slane %v369, 0
    %373 = vmatpush.msra.mxu0 %v368
    %374 = vmatpush.msra.mxu0 %v367
    %375 = vmatpush.msra.mxu0 %v366
    %376 = vmatpush.msra.mxu0 %v365
    %377 = vmatpush.msra.mxu0 %v364
    %378 = vmatpush.msra.mxu0 %v363
    %379 = vmatpush.msra.mxu0 %v362
    %380 = vmatpush.msra.mxu0 %v361
    %381 = vmatpush.msra.mxu0 %v360
    %382 = vmatpush.msra.mxu0 %v359
    %383 = vmatpush.msra.mxu0 %v358
    %384 = vmatpush.msra.mxu0 %v357
    %385 = vmatpush.msra.mxu0 %v356
    %386 = vmatpush.msra.mxu0 %v355
    %387 = vmatpush.msra.mxu0 %v354
    %388 = vmatpush.msra.mxu0 %v353
    %389 = vmatmul.f32.gmra.mxu0 %v352
    %v390 = vpop.f32.mrf.mxu0
    %v391 = vadd.f32 %v371, %v390
    %392 = vdwg.mxu0
    %393 = vst [vmem:[#allocation14] sm:$0xff] %v391
    // Predicated region
    $region82: #{tpu_custom_call.1} parent=1 // pred_check
      _
    $region83: #{tpu_custom_call.1} parent=1 // pred_check_branch
      %395 = sbr.rel (0) target = $region85
    $region84: #{tpu_custom_call.1} parent=1 // pred_region
      %397 = vsyncadd [#allocation4], 0
      %s399 = sshll.u32 [#allocation14], 4
      %s400 = int_to_ptr.vmem [resolvable:$true] %s399
      %s401 = sshll.u32 %s13, 4
      %s402 = int_to_ptr.hbm [resolvable:$true] %s401
      %404 = dma.vmem_to_hbm [thread:$0]  %s400, 128, %s402, [#allocation4]
    $region85: #{tpu_custom_call.1} parent=1 // pred_fallthru
      _
    // Predicated region
    $region86: #{tpu_custom_call.1} parent=1 // pred_check
      _
    $region87: #{tpu_custom_call.1} parent=1 // pred_check_branch
      %406 = sbr.rel (0) target = $region89
    $region88: #{tpu_custom_call.1} parent=1 // pred_region
      %408 = vsyncadd [#allocation16], 0
      %s410 = sshll.u32 [#allocation15], 4
      %s411 = int_to_ptr.vmem [resolvable:$true] %s410
      %s412 = sshll.u32 %s14, 4
      %s413 = int_to_ptr.hbm [resolvable:$true] %s412
      %415 = dma.vmem_to_hbm [thread:$0]  %s411, 128, %s413, [#allocation16]
    $region89: #{tpu_custom_call.1} parent=1 // pred_fallthru
      _
    // Predicated region
    $region90: #{tpu_custom_call.1} parent=1 // pred_check
      _
    $region91: #{tpu_custom_call.1} parent=1 // pred_check_branch
      %417 = sbr.rel (0) target = $region93
    $region92: #{tpu_custom_call.1} parent=1 // pred_region
      %419 = dma.done [#allocation4], 128
    $region93: #{tpu_custom_call.1} parent=1 // pred_fallthru
      _
    // Predicated region
    $region94: #{tpu_custom_call.1} parent=1 // pred_check
      _
    $region95: #{tpu_custom_call.1} parent=1 // pred_check_branch
      %421 = sbr.rel (0) target = $region97
    $region96: #{tpu_custom_call.1} parent=1 // pred_region
      %423 = dma.done [#allocation16], 128
    $region97: #{tpu_custom_call.1} parent=1 // pred_fallthru
      _
    %424 = vsyncpa [#allocation3], 1
    %425 = vsyncpa [#allocation6], 1
    %426 = vsyncpa [#allocation9], 1
    %427 = vsyncpa [#allocation12], 1
    %428 = vsyncpa [#allocation4], 1
    %429 = vsyncpa [#allocation16], 1

// kernel: tpu_custom_call.1
$region0: #{tpu_custom_call.1}
  #allocation0 [shape = 'u32[]', space=smem, size = 0x4, offset = 0x4, fixed_abs, tag = 'smem constant byte address 0x4 - core index']
  #allocation1 [shape = 'u32[72,128]{1,0:T(1,128)}', space=vmem, size = 0x9000, scoped, tag = 'internal scratch']
  %s0 = inlined_call_operand.hbm [shape: f32[8,32], index: 0, kind: input, shape index: {}]
  %s1 = inlined_call_operand.hbm [shape: f32[32,128], index: 1, kind: input, shape index: {}]
  %s2 = inlined_call_operand.vmem [shape: f32[1,128], index: 2, kind: input, shape index: {}]
  %s3 = inlined_call_operand.hbm [shape: f32[128,128], index: 3, kind: input, shape index: {}]
  %s4 = inlined_call_operand.vmem [shape: f32[1,128], index: 4, kind: input, shape index: {}]
  %s5 = inlined_call_operand.hbm [shape: f32[128,128], index: 5, kind: input, shape index: {}]
  %s6 = inlined_call_operand.vmem [shape: f32[1,128], index: 6, kind: input, shape index: {}]
  %s7 = inlined_call_operand.hbm [shape: f32[128,128], index: 7, kind: input, shape index: {}]
  %s8 = inlined_call_operand.vmem [shape: f32[1,128], index: 8, kind: input, shape index: {}]
  %s9 = inlined_call_operand.hbm [shape: f32[128,128], index: 9, kind: input, shape index: {}]
  %s10 = inlined_call_operand.vmem [shape: f32[1,128], index: 10, kind: input, shape index: {}]
  %s11 = inlined_call_operand.hbm [shape: f32[128,128], index: 11, kind: input, shape index: {}]
  %s12 = inlined_call_operand.vmem [shape: f32[1,128], index: 12, kind: input, shape index: {}]
  %s13 = inlined_call_operand.hbm [shape: f32[8,128], index: 13, kind: output, shape index: {0}]
  %s14 = inlined_call_operand.hbm [shape: f32[8,128], index: 14, kind: output, shape index: {1}]
  %15 = xla_tuple %s13, %s14
  %s16 = sld [smem:[#allocation0]]
  $region98: #{tpu_custom_call.1} parent=0
    _
  %s18 = ssub.s32 1, %s16
  %s19 = scalar_select 0, %s18, %s16
  $region1: #{tpu_custom_call.1} parent=0
    #allocation2 [shape = 'u8[4096]{0}', space=vmem, size = 0x1000, scoped, tag = 'input window, operand 0, single buffered']
    #allocation3 [shape = 's32[1]{0}', space=sflag, size = 0x4, scoped, tag = 'scoped memory for tpu_custom_call.1']
    #allocation4 [shape = 's32[1]{0}', space=sflag, size = 0x4, scoped, tag = 'scoped memory for tpu_custom_call.1']
    #allocation5 [shape = 'u8[16384]{0}', space=vmem, size = 0x4000, scoped, tag = 'input window, operand 1, single buffered']
    #allocation6 [shape = 's32[1]{0}', space=sflag, size = 0x4, scoped, tag = 'scoped memory for tpu_custom_call.1']
    #allocation7 [shape = 'u8[65536]{0}', space=vmem, size = 0x10000, scoped, tag = 'input window, operand 3, single buffered']
    #allocation8 [shape = 'u8[65536]{0}', space=vmem, size = 0x10000, scoped, tag = 'input window, operand 5, single buffered']
    #allocation9 [shape = 's32[1]{0}', space=sflag, size = 0x4, scoped, tag = 'scoped memory for tpu_custom_call.1']
    #allocation10 [shape = 'u8[65536]{0}', space=vmem, size = 0x10000, scoped, tag = 'input window, operand 7, single buffered']
    #allocation11 [shape = 'u8[65536]{0}', space=vmem, size = 0x10000, scoped, tag = 'input window, operand 9, single buffered']
    #allocation12 [shape = 's32[1]{0}', space=sflag, size = 0x4, scoped, tag = 'scoped memory for tpu_custom_call.1']
    #allocation13 [shape = 'u8[65536]{0}', space=vmem, size = 0x10000, scoped, tag = 'input window, operand 11, single buffered']
    #allocation14 [shape = 'u8[4096]{0}', space=vmem, size = 0x1000, scoped, tag = 'output window, operand 0, single buffered']
    #allocation15 [shape = 'u8[4096]{0}', space=vmem, size = 0x1000, scoped, tag = 'output window, operand 1, single buffered']
    #allocation16 [shape = 's32[1]{0}', space=sflag, size = 0x4, scoped, tag = 'scoped memory for tpu_custom_call.1']
    %20 = vsyncpa [#allocation3], 0
    %21 = vsyncpa [#allocation6], 0
    %22 = vsyncpa [#allocation9], 0
    %23 = vsyncpa [#allocation12], 0
    %24 = vsyncpa [#allocation4], 0
    %25 = vsyncpa [#allocation16], 0
    // Predicated region
    $region2: #{tpu_custom_call.1} parent=1 // pred_check
      _
    $region3: #{tpu_custom_call.1} parent=1 // pred_check_branch
      %27 = sbr.rel (0) target = $region5
    $region4: #{tpu_custom_call.1} parent=1 // pred_region
      %29 = vsyncadd [#allocation3], 0
      %s31 = sshll.u32 %s0, 4
      %s32 = int_to_ptr.hbm [resolvable:$true] %s31
      %s33 = sshll.u32 [#allocation2], 4
      %s34 = int_to_ptr.vmem [resolvable:$true] %s33
      %36 = dma.hbm_to_vmem [thread:$0]  %s32, 128, %s34, [#allocation3]
    $region5: #{tpu_custom_call.1} parent=1 // pred_fallthru
      _
    // Predicated region
    $region6: #{tpu_custom_call.1} parent=1 // pred_check
      _
    $region7: #{tpu_custom_call.1} parent=1 // pred_check_branch
      %38 = sbr.rel (0) target = $region9
    $region8: #{tpu_custom_call.1} parent=1 // pred_region
      %40 = vsyncadd [#allocation6], 0
      %s41 = sshll.u32 %s1, 4
      %s42 = int_to_ptr.hbm [resolvable:$true] %s41
      %s43 = sshll.u32 [#allocation5], 4
      %s44 = int_to_ptr.vmem [resolvable:$true] %s43
      %49 = dma.hbm_to_vmem [thread:$0]  %s42, 512, %s44, [#allocation6], 128, 128, 8
    $region9: #{tpu_custom_call.1} parent=1 // pred_fallthru
      _
    // Predicated region
    $region10: #{tpu_custom_call.1} parent=1 // pred_check
      _
    $region11: #{tpu_custom_call.1} parent=1 // pred_check_branch
      %51 = sbr.rel (0) target = $region13
    $region12: #{tpu_custom_call.1} parent=1 // pred_region
      _
    $region13: #{tpu_custom_call.1} parent=1 // pred_fallthru
      _
    // Predicated region
    $region14: #{tpu_custom_call.1} parent=1 // pred_check
      _
    $region15: #{tpu_custom_call.1} parent=1 // pred_check_branch
      %53 = sbr.rel (0) target = $region17
    $region16: #{tpu_custom_call.1} parent=1 // pred_region
      %55 = vsyncadd [#allocation6], 0
      %s56 = sshll.u32 %s3, 4
      %s57 = int_to_ptr.hbm [resolvable:$true] %s56
      %s58 = sshll.u32 [#allocation7], 4
      %s59 = int_to_ptr.vmem [resolvable:$true] %s58
      %64 = dma.hbm_to_vmem [thread:$0]  %s57, 2048, %s59, [#allocation6], 128, 128, 8
    $region17: #{tpu_custom_call.1} parent=1 // pred_fallthru
      _
    // Predicated region
    $region18: #{tpu_custom_call.1} parent=1 // pred_check
      _
    $region19: #{tpu_custom_call.1} parent=1 // pred_check_branch
      %66 = sbr.rel (0) target = $region21
    $region20: #{tpu_custom_call.1} parent=1 // pred_region
      _
    $region21: #{tpu_custom_call.1} parent=1 // pred_fallthru
      _
    // Predicated region
    $region22: #{tpu_custom_call.1} parent=1 // pred_check
      _
    $region23: #{tpu_custom_call.1} parent=1 // pred_check_branch
      %68 = sbr.rel (0) target = $region25
    $region24: #{tpu_custom_call.1} parent=1 // pred_region
      %70 = vsyncadd [#allocation9], 0
      %s71 = sshll.u32 %s5, 4
      %s72 = int_to_ptr.hbm [resolvable:$true] %s71
      %s73 = sshll.u32 [#allocation8], 4
      %s74 = int_to_ptr.vmem [resolvable:$true] %s73
      %79 = dma.hbm_to_vmem [thread:$0]  %s72, 2048, %s74, [#allocation9], 128, 128, 8
    $region25: #{tpu_custom_call.1} parent=1 // pred_fallthru
      _
    // Predicated region
    $region26: #{tpu_custom_call.1} parent=1 // pred_check
      _
    $region27: #{tpu_custom_call.1} parent=1 // pred_check_branch
      %81 = sbr.rel (0) target = $region29
    $region28: #{tpu_custom_call.1} parent=1 // pred_region
      _
    $region29: #{tpu_custom_call.1} parent=1 // pred_fallthru
      _
    // Predicated region
    $region30: #{tpu_custom_call.1} parent=1 // pred_check
      _
    $region31: #{tpu_custom_call.1} parent=1 // pred_check_branch
      %83 = sbr.rel (0) target = $region33
    $region32: #{tpu_custom_call.1} parent=1 // pred_region
      %85 = vsyncadd [#allocation9], 0
      %s86 = sshll.u32 %s7, 4
      %s87 = int_to_ptr.hbm [resolvable:$true] %s86
      %s88 = sshll.u32 [#allocation10], 4
      %s89 = int_to_ptr.vmem [resolvable:$true] %s88
      %94 = dma.hbm_to_vmem [thread:$0]  %s87, 2048, %s89, [#allocation9], 128, 128, 8
    $region33: #{tpu_custom_call.1} parent=1 // pred_fallthru
      _
    // Predicated region
    $region34: #{tpu_custom_call.1} parent=1 // pred_check
      _
    $region35: #{tpu_custom_call.1} parent=1 // pred_check_branch
      %96 = sbr.rel (0) target = $region37
    $region36: #{tpu_custom_call.1} parent=1 // pred_region
      _
    $region37: #{tpu_custom_call.1} parent=1 // pred_fallthru
      _
    // Predicated region
    $region38: #{tpu_custom_call.1} parent=1 // pred_check
      _
    $region39: #{tpu_custom_call.1} parent=1 // pred_check_branch
      %98 = sbr.rel (0) target = $region41
    $region40: #{tpu_custom_call.1} parent=1 // pred_region
      %100 = vsyncadd [#allocation12], 0
      %s101 = sshll.u32 %s9, 4
      %s102 = int_to_ptr.hbm [resolvable:$true] %s101
      %s103 = sshll.u32 [#allocation11], 4
      %s104 = int_to_ptr.vmem [resolvable:$true] %s103
      %109 = dma.hbm_to_vmem [thread:$0]  %s102, 2048, %s104, [#allocation12], 128, 128, 8
    $region41: #{tpu_custom_call.1} parent=1 // pred_fallthru
      _
    // Predicated region
    $region42: #{tpu_custom_call.1} parent=1 // pred_check
      _
    $region43: #{tpu_custom_call.1} parent=1 // pred_check_branch
      %111 = sbr.rel (0) target = $region45
    $region44: #{tpu_custom_call.1} parent=1 // pred_region
      _
    $region45: #{tpu_custom_call.1} parent=1 // pred_fallthru
      _
    // Predicated region
    $region46: #{tpu_custom_call.1} parent=1 // pred_check
      _
    $region47: #{tpu_custom_call.1} parent=1 // pred_check_branch
      %113 = sbr.rel (0) target = $region49
    $region48: #{tpu_custom_call.1} parent=1 // pred_region
      %115 = vsyncadd [#allocation12], 0
      %s116 = sshll.u32 %s11, 4
      %s117 = int_to_ptr.hbm [resolvable:$true] %s116
      %s118 = sshll.u32 [#allocation13], 4
      %s119 = int_to_ptr.vmem [resolvable:$true] %s118
      %124 = dma.hbm_to_vmem [thread:$0]  %s117, 2048, %s119, [#allocation12], 128, 128, 8
    $region49: #{tpu_custom_call.1} parent=1 // pred_fallthru
      _
    // Predicated region
    $region50: #{tpu_custom_call.1} parent=1 // pred_check
      _
    $region51: #{tpu_custom_call.1} parent=1 // pred_check_branch
      %126 = sbr.rel (0) target = $region53
    $region52: #{tpu_custom_call.1} parent=1 // pred_region
      _
    $region53: #{tpu_custom_call.1} parent=1 // pred_fallthru
      _
    // Predicated region
    $region54: #{tpu_custom_call.1} parent=1 // pred_check
      _
    $region55: #{tpu_custom_call.1} parent=1 // pred_check_branch
      %128 = sbr.rel (0) target = $region57
    $region56: #{tpu_custom_call.1} parent=1 // pred_region
      %130 = dma.done [#allocation3], 128
    $region57: #{tpu_custom_call.1} parent=1 // pred_fallthru
      _
    // Predicated region
    $region58: #{tpu_custom_call.1} parent=1 // pred_check
      _
    $region59: #{tpu_custom_call.1} parent=1 // pred_check_branch
      %132 = sbr.rel (0) target = $region61
    $region60: #{tpu_custom_call.1} parent=1 // pred_region
      %134 = dma.done [#allocation6], 512
    $region61: #{tpu_custom_call.1} parent=1 // pred_fallthru
      _
    // Predicated region
    $region62: #{tpu_custom_call.1} parent=1 // pred_check
      _
    $region63: #{tpu_custom_call.1} parent=1 // pred_check_branch
      %136 = sbr.rel (0) target = $region65
    $region64: #{tpu_custom_call.1} parent=1 // pred_region
      %138 = dma.done [#allocation6], 2048
    $region65: #{tpu_custom_call.1} parent=1 // pred_fallthru
      _
    // Predicated region
    $region66: #{tpu_custom_call.1} parent=1 // pred_check
      _
    $region67: #{tpu_custom_call.1} parent=1 // pred_check_branch
      %140 = sbr.rel (0) target = $region69
    $region68: #{tpu_custom_call.1} parent=1 // pred_region
      %142 = dma.done [#allocation9], 2048
    $region69: #{tpu_custom_call.1} parent=1 // pred_fallthru
      _
    // Predicated region
    $region70: #{tpu_custom_call.1} parent=1 // pred_check
      _
    $region71: #{tpu_custom_call.1} parent=1 // pred_check_branch
      %144 = sbr.rel (0) target = $region73
    $region72: #{tpu_custom_call.1} parent=1 // pred_region
      %146 = dma.done [#allocation9], 2048
    $region73: #{tpu_custom_call.1} parent=1 // pred_fallthru
      _
    // Predicated region
    $region74: #{tpu_custom_call.1} parent=1 // pred_check
      _
    $region75: #{tpu_custom_call.1} parent=1 // pred_check_branch
      %148 = sbr.rel (0) target = $region77
    $region76: #{tpu_custom_call.1} parent=1 // pred_region
      %150 = dma.done [#allocation12], 2048
    $region77: #{tpu_custom_call.1} parent=1 // pred_fallthru
      _
    // Predicated region
    $region78: #{tpu_custom_call.1} parent=1 // pred_check
      _
    $region79: #{tpu_custom_call.1} parent=1 // pred_check_branch
      %152 = sbr.rel (0) target = $region81
    $region80: #{tpu_custom_call.1} parent=1 // pred_region
      %154 = dma.done [#allocation12], 2048
    $region81: #{tpu_custom_call.1} parent=1 // pred_fallthru
      _
    %v155 = vld [vmem:[#allocation2] sm:$0xff]
    %v156 = vld [vmem:[#allocation5] sm:$0xff]
    %v157 = vld [vmem:[#allocation5 + $0x8] sm:$0xff]
    %v158 = vld [vmem:[#allocation5 + $0x10] sm:$0xff]
    %v159 = vld [vmem:[#allocation5 + $0x18] sm:$0xff]
    %v160 = vld [vmem:[%s2] sm:$0x1]
    %v162 = vperm.slane %v160, 0
    %vm164 = vcmask 261120
    %v166 = vsel %vm164, %v155, 0
    %168 = vmatpush.msra.mxu0 0.0
    %169 = vmatpush.msra.mxu0 0.0
    %170 = vmatpush.msra.mxu0 0.0
    %171 = vmatpush.msra.mxu0 0.0
    %172 = vmatpush.msra.mxu0 0.0
    %173 = vmatpush.msra.mxu0 0.0
    %174 = vmatpush.msra.mxu0 0.0
    %175 = vmatpush.msra.mxu0 0.0
    %176 = vmatpush.msra.mxu0 0.0
    %177 = vmatpush.msra.mxu0 0.0
    %178 = vmatpush.msra.mxu0 0.0
    %179 = vmatpush.msra.mxu0 0.0
    %180 = vmatpush.msra.mxu0 %v159
    %181 = vmatpush.msra.mxu0 %v158
    %182 = vmatpush.msra.mxu0 %v157
    %183 = vmatpush.msra.mxu0 %v156
    %184 = vmatmul.f32.gmra.mxu0 %v166
    %v185 = vpop.f32.mrf.mxu0
    %v186 = vadd.f32 %v162, %v185
    %187 = vdwg.mxu0
    %v188 = vmax.f32 %v186, 0.0
    %v189 = vld [vmem:[#allocation7] sm:$0xff]
    %v190 = vld [vmem:[#allocation7 + $0x8] sm:$0xff]
    %v191 = vld [vmem:[#allocation7 + $0x10] sm:$0xff]
    %v192 = vld [vmem:[#allocation7 + $0x18] sm:$0xff]
    %v193 = vld [vmem:[#allocation7 + $0x20] sm:$0xff]
    %v194 = vld [vmem:[#allocation7 + $0x28] sm:$0xff]
    %v195 = vld [vmem:[#allocation7 + $0x30] sm:$0xff]
    %v196 = vld [vmem:[#allocation7 + $0x38] sm:$0xff]
    %v197 = vld [vmem:[#allocation7 + $0x40] sm:$0xff]
    %v198 = vld [vmem:[#allocation7 + $0x48] sm:$0xff]
    %v199 = vld [vmem:[#allocation7 + $0x50] sm:$0xff]
    %v200 = vld [vmem:[#allocation7 + $0x58] sm:$0xff]
    %v201 = vld [vmem:[#allocation7 + $0x60] sm:$0xff]
    %v202 = vld [vmem:[#allocation7 + $0x68] sm:$0xff]
    %v203 = vld [vmem:[#allocation7 + $0x70] sm:$0xff]
    %v204 = vld [vmem:[#allocation7 + $0x78] sm:$0xff]
    %v205 = vld [vmem:[%s4] sm:$0x1]
    %v207 = vperm.slane %v205, 0
    %209 = vmatpush.msra.mxu0 %v204
    %210 = vmatpush.msra.mxu0 %v203
    %211 = vmatpush.msra.mxu0 %v202
    %212 = vmatpush.msra.mxu0 %v201
    %213 = vmatpush.msra.mxu0 %v200
    %214 = vmatpush.msra.mxu0 %v199
    %215 = vmatpush.msra.mxu0 %v198
    %216 = vmatpush.msra.mxu0 %v197
    %217 = vmatpush.msra.mxu0 %v196
    %218 = vmatpush.msra.mxu0 %v195
    %219 = vmatpush.msra.mxu0 %v194
    %220 = vmatpush.msra.mxu0 %v193
    %221 = vmatpush.msra.mxu0 %v192
    %222 = vmatpush.msra.mxu0 %v191
    %223 = vmatpush.msra.mxu0 %v190
    %224 = vmatpush.msra.mxu0 %v189
    %225 = vmatmul.f32.gmra.mxu0 %v188
    %v226 = vpop.f32.mrf.mxu0
    %v227 = vadd.f32 %v207, %v226
    %228 = vdwg.mxu0
    %v229 = vmax.f32 %v227, 0.0
    %v230 = vld [vmem:[#allocation8] sm:$0xff]
    %v231 = vld [vmem:[#allocation8 + $0x8] sm:$0xff]
    %v232 = vld [vmem:[#allocation8 + $0x10] sm:$0xff]
    %v233 = vld [vmem:[#allocation8 + $0x18] sm:$0xff]
    %v234 = vld [vmem:[#allocation8 + $0x20] sm:$0xff]
    %v235 = vld [vmem:[#allocation8 + $0x28] sm:$0xff]
    %v236 = vld [vmem:[#allocation8 + $0x30] sm:$0xff]
    %v237 = vld [vmem:[#allocation8 + $0x38] sm:$0xff]
    %v238 = vld [vmem:[#allocation8 + $0x40] sm:$0xff]
    %v239 = vld [vmem:[#allocation8 + $0x48] sm:$0xff]
    %v240 = vld [vmem:[#allocation8 + $0x50] sm:$0xff]
    %v241 = vld [vmem:[#allocation8 + $0x58] sm:$0xff]
    %v242 = vld [vmem:[#allocation8 + $0x60] sm:$0xff]
    %v243 = vld [vmem:[#allocation8 + $0x68] sm:$0xff]
    %v244 = vld [vmem:[#allocation8 + $0x70] sm:$0xff]
    %v245 = vld [vmem:[#allocation8 + $0x78] sm:$0xff]
    %v246 = vld [vmem:[%s6] sm:$0x1]
    %v248 = vperm.slane %v246, 0
    %250 = vmatpush.msra.mxu0 %v245
    %251 = vmatpush.msra.mxu0 %v244
    %252 = vmatpush.msra.mxu0 %v243
    %253 = vmatpush.msra.mxu0 %v242
    %254 = vmatpush.msra.mxu0 %v241
    %255 = vmatpush.msra.mxu0 %v240
    %256 = vmatpush.msra.mxu0 %v239
    %257 = vmatpush.msra.mxu0 %v238
    %258 = vmatpush.msra.mxu0 %v237
    %259 = vmatpush.msra.mxu0 %v236
    %260 = vmatpush.msra.mxu0 %v235
    %261 = vmatpush.msra.mxu0 %v234
    %262 = vmatpush.msra.mxu0 %v233
    %263 = vmatpush.msra.mxu0 %v232
    %264 = vmatpush.msra.mxu0 %v231
    %265 = vmatpush.msra.mxu0 %v230
    %266 = vmatmul.f32.gmra.mxu0 %v229
    %v267 = vpop.f32.mrf.mxu0
    %v268 = vadd.f32 %v248, %v267
    %269 = vdwg.mxu0
    %270 = vst [vmem:[#allocation15] sm:$0xff] %v268
    %v271 = vld [vmem:[#allocation10] sm:$0xff]
    %v272 = vld [vmem:[#allocation10 + $0x8] sm:$0xff]
    %v273 = vld [vmem:[#allocation10 + $0x10] sm:$0xff]
    %v274 = vld [vmem:[#allocation10 + $0x18] sm:$0xff]
    %v275 = vld [vmem:[#allocation10 + $0x20] sm:$0xff]
    %v276 = vld [vmem:[#allocation10 + $0x28] sm:$0xff]
    %v277 = vld [vmem:[#allocation10 + $0x30] sm:$0xff]
    %v278 = vld [vmem:[#allocation10 + $0x38] sm:$0xff]
    %v279 = vld [vmem:[#allocation10 + $0x40] sm:$0xff]
    %v280 = vld [vmem:[#allocation10 + $0x48] sm:$0xff]
    %v281 = vld [vmem:[#allocation10 + $0x50] sm:$0xff]
    %v282 = vld [vmem:[#allocation10 + $0x58] sm:$0xff]
    %v283 = vld [vmem:[#allocation10 + $0x60] sm:$0xff]
    %v284 = vld [vmem:[#allocation10 + $0x68] sm:$0xff]
    %v285 = vld [vmem:[#allocation10 + $0x70] sm:$0xff]
    %v286 = vld [vmem:[#allocation10 + $0x78] sm:$0xff]
    %v287 = vld [vmem:[%s8] sm:$0x1]
    %v289 = vperm.slane %v287, 0
    %291 = vmatpush.msra.mxu0 %v286
    %292 = vmatpush.msra.mxu0 %v285
    %293 = vmatpush.msra.mxu0 %v284
    %294 = vmatpush.msra.mxu0 %v283
    %295 = vmatpush.msra.mxu0 %v282
    %296 = vmatpush.msra.mxu0 %v281
    %297 = vmatpush.msra.mxu0 %v280
    %298 = vmatpush.msra.mxu0 %v279
    %299 = vmatpush.msra.mxu0 %v278
    %300 = vmatpush.msra.mxu0 %v277
    %301 = vmatpush.msra.mxu0 %v276
    %302 = vmatpush.msra.mxu0 %v275
    %303 = vmatpush.msra.mxu0 %v274
    %304 = vmatpush.msra.mxu0 %v273
    %305 = vmatpush.msra.mxu0 %v272
    %306 = vmatpush.msra.mxu0 %v271
    %307 = vmatmul.f32.gmra.mxu0 %v268
    %v308 = vpop.f32.mrf.mxu0
    %v309 = vadd.f32 %v289, %v308
    %310 = vdwg.mxu0
    %v311 = vmax.f32 %v309, 0.0
    %v312 = vld [vmem:[#allocation11] sm:$0xff]
    %v313 = vld [vmem:[#allocation11 + $0x8] sm:$0xff]
    %v314 = vld [vmem:[#allocation11 + $0x10] sm:$0xff]
    %v315 = vld [vmem:[#allocation11 + $0x18] sm:$0xff]
    %v316 = vld [vmem:[#allocation11 + $0x20] sm:$0xff]
    %v317 = vld [vmem:[#allocation11 + $0x28] sm:$0xff]
    %v318 = vld [vmem:[#allocation11 + $0x30] sm:$0xff]
    %v319 = vld [vmem:[#allocation11 + $0x38] sm:$0xff]
    %v320 = vld [vmem:[#allocation11 + $0x40] sm:$0xff]
    %v321 = vld [vmem:[#allocation11 + $0x48] sm:$0xff]
    %v322 = vld [vmem:[#allocation11 + $0x50] sm:$0xff]
    %v323 = vld [vmem:[#allocation11 + $0x58] sm:$0xff]
    %v324 = vld [vmem:[#allocation11 + $0x60] sm:$0xff]
    %v325 = vld [vmem:[#allocation11 + $0x68] sm:$0xff]
    %v326 = vld [vmem:[#allocation11 + $0x70] sm:$0xff]
    %v327 = vld [vmem:[#allocation11 + $0x78] sm:$0xff]
    %v328 = vld [vmem:[%s10] sm:$0x1]
    %v330 = vperm.slane %v328, 0
    %332 = vmatpush.msra.mxu0 %v327
    %333 = vmatpush.msra.mxu0 %v326
    %334 = vmatpush.msra.mxu0 %v325
    %335 = vmatpush.msra.mxu0 %v324
    %336 = vmatpush.msra.mxu0 %v323
    %337 = vmatpush.msra.mxu0 %v322
    %338 = vmatpush.msra.mxu0 %v321
    %339 = vmatpush.msra.mxu0 %v320
    %340 = vmatpush.msra.mxu0 %v319
    %341 = vmatpush.msra.mxu0 %v318
    %342 = vmatpush.msra.mxu0 %v317
    %343 = vmatpush.msra.mxu0 %v316
    %344 = vmatpush.msra.mxu0 %v315
    %345 = vmatpush.msra.mxu0 %v314
    %346 = vmatpush.msra.mxu0 %v313
    %347 = vmatpush.msra.mxu0 %v312
    %348 = vmatmul.f32.gmra.mxu0 %v311
    %v349 = vpop.f32.mrf.mxu0
    %v350 = vadd.f32 %v330, %v349
    %351 = vdwg.mxu0
    %v352 = vmax.f32 %v350, 0.0
    %v353 = vld [vmem:[#allocation13] sm:$0xff]
    %v354 = vld [vmem:[#allocation13 + $0x8] sm:$0xff]
    %v355 = vld [vmem:[#allocation13 + $0x10] sm:$0xff]
    %v356 = vld [vmem:[#allocation13 + $0x18] sm:$0xff]
    %v357 = vld [vmem:[#allocation13 + $0x20] sm:$0xff]
    %v358 = vld [vmem:[#allocation13 + $0x28] sm:$0xff]
    %v359 = vld [vmem:[#allocation13 + $0x30] sm:$0xff]
    %v360 = vld [vmem:[#allocation13 + $0x38] sm:$0xff]
    %v361 = vld [vmem:[#allocation13 + $0x40] sm:$0xff]
    %v362 = vld [vmem:[#allocation13 + $0x48] sm:$0xff]
    %v363 = vld [vmem:[#allocation13 + $0x50] sm:$0xff]
    %v364 = vld [vmem:[#allocation13 + $0x58] sm:$0xff]
    %v365 = vld [vmem:[#allocation13 + $0x60] sm:$0xff]
    %v366 = vld [vmem:[#allocation13 + $0x68] sm:$0xff]
    %v367 = vld [vmem:[#allocation13 + $0x70] sm:$0xff]
    %v368 = vld [vmem:[#allocation13 + $0x78] sm:$0xff]
    %v369 = vld [vmem:[%s12] sm:$0x1]
    %v371 = vperm.slane %v369, 0
    %373 = vmatpush.msra.mxu0 %v368
    %374 = vmatpush.msra.mxu0 %v367
    %375 = vmatpush.msra.mxu0 %v366
    %376 = vmatpush.msra.mxu0 %v365
    %377 = vmatpush.msra.mxu0 %v364
    %378 = vmatpush.msra.mxu0 %v363
    %379 = vmatpush.msra.mxu0 %v362
    %380 = vmatpush.msra.mxu0 %v361
    %381 = vmatpush.msra.mxu0 %v360
    %382 = vmatpush.msra.mxu0 %v359
    %383 = vmatpush.msra.mxu0 %v358
    %384 = vmatpush.msra.mxu0 %v357
    %385 = vmatpush.msra.mxu0 %v356
    %386 = vmatpush.msra.mxu0 %v355
    %387 = vmatpush.msra.mxu0 %v354
    %388 = vmatpush.msra.mxu0 %v353
    %389 = vmatmul.f32.gmra.mxu0 %v352
    %v390 = vpop.f32.mrf.mxu0
    %v391 = vadd.f32 %v371, %v390
    %392 = vdwg.mxu0
    %393 = vst [vmem:[#allocation14] sm:$0xff] %v391
    // Predicated region
    $region82: #{tpu_custom_call.1} parent=1 // pred_check
      _
    $region83: #{tpu_custom_call.1} parent=1 // pred_check_branch
      %395 = sbr.rel (0) target = $region85
    $region84: #{tpu_custom_call.1} parent=1 // pred_region
      %397 = vsyncadd [#allocation4], 0
      %s399 = sshll.u32 [#allocation14], 4
      %s400 = int_to_ptr.vmem [resolvable:$true] %s399
      %s401 = sshll.u32 %s13, 4
      %s402 = int_to_ptr.hbm [resolvable:$true] %s401
      %404 = dma.vmem_to_hbm [thread:$0]  %s400, 128, %s402, [#allocation4]
    $region85: #{tpu_custom_call.1} parent=1 // pred_fallthru
      _
    // Predicated region
    $region86: #{tpu_custom_call.1} parent=1 // pred_check
      _
    $region87: #{tpu_custom_call.1} parent=1 // pred_check_branch
      %406 = sbr.rel (0) target = $region89
    $region88: #{tpu_custom_call.1} parent=1 // pred_region
      %408 = vsyncadd [#allocation16], 0
      %s410 = sshll.u32 [#allocation15], 4
      %s411 = int_to_ptr.vmem [resolvable:$true] %s410
      %s412 = sshll.u32 %s14, 4
      %s413 = int_to_ptr.hbm [resolvable:$true] %s412
      %415 = dma.vmem_to_hbm [thread:$0]  %s411, 128, %s413, [#allocation16]
    $region89: #{tpu_custom_call.1} parent=1 // pred_fallthru
      _
    // Predicated region
    $region90: #{tpu_custom_call.1} parent=1 // pred_check
      _
    $region91: #{tpu_custom_call.1} parent=1 // pred_check_branch
      %417 = sbr.rel (0) target = $region93
    $region92: #{tpu_custom_call.1} parent=1 // pred_region
      %419 = dma.done [#allocation4], 128
    $region93: #{tpu_custom_call.1} parent=1 // pred_fallthru
      _
    // Predicated region
    $region94: #{tpu_custom_call.1} parent=1 // pred_check
      _
    $region95: #{tpu_custom_call.1} parent=1 // pred_check_branch
      %421 = sbr.rel (0) target = $region97
    $region96: #{tpu_custom_call.1} parent=1 // pred_region
      %423 = dma.done [#allocation16], 128
    $region97: #{tpu_custom_call.1} parent=1 // pred_fallthru
      _
    %424 = vsyncpa [#allocation3], 1
    %425 = vsyncpa [#allocation6], 1
    %426 = vsyncpa [#allocation9], 1
    %427 = vsyncpa [#allocation12], 1
    %428 = vsyncpa [#allocation4], 1
    %429 = vsyncpa [#allocation16], 1

</llo_original>
